<compile_context>
chip_gen: v5e
topology: v5e:2x2
jax: 0.10.0
libtpu: 0.0.40
codegen_flags: <defaults>
</compile_context>

<pallas_src>
import functools

import jax
import jax.numpy as jnp
from jax.experimental import pallas as pl
from jax.experimental.pallas import tpu as pltpu

VMEM_SPEC = pl.BlockSpec(memory_space=pltpu.MemorySpace.VMEM)
_BN_EPS = 1e-5


# ----------------------------------------------------------------------------
# Single fused kernel: LSTM recurrence (last hidden state) + whole MLP head.
# ----------------------------------------------------------------------------
def fused_forward_kernel(xw_ref, y1s_ref, slab_ref, out_ref, *, Z, slots,
                         n_hidden):
    """All-VMEM fused LSTM + MLP head.

    xw_ref   [T, 4B, Z]  gate-major projected sequence inputs (W_ih, b folded)
    y1s_ref  [B, D1]     static part of first-layer pre-activation
                         (cat embeddings, numerical BN, b1 already folded in)
    slab_ref [R, L]      packed weights; slots[k] = (row_off, rows, cols) with
                         order: whh_gm, w1_lstm, s1, sh1,
                                [w, b, s, sh] per extra hidden layer,
                                w_out, b_out
    out_ref  [B, O]
    """
    T = xw_ref.shape[0]
    B = xw_ref.shape[1] // 4

    def rd(k):
        off, nrows, ncols = slots[k]
        return slab_ref[off:off + nrows, 0:ncols]

    # Recurrent weights, gate-major rows: whh[g*Z + j, k] = d pre_g[k] / d h[j]
    whh = rd(0)
    # Hoisted loop-invariant [1, Z] row views.
    whh_rows = [[whh[g * Z + j: g * Z + j + 1, :] for j in range(Z)]
                for g in range(4)]

    h = jnp.zeros((B, Z), jnp.float32)
    c = jnp.zeros((B, Z), jnp.float32)
    # T is small and static -> unrolled.
    # TODO(synk): switch to lax.fori_loop(..., unroll=2..4) with xw staged in a
    # VMEM scratch if T ever grows beyond ~16-32 (vreg pressure / compile time).
    for t in range(T):
        xw_t = xw_ref[t]                                   # [4B, Z]
        # Gate blocks at sublane offsets 0/B/2B/3B -> aligned, free slices.
        pre = [xw_t[g * B:(g + 1) * B, :] for g in range(4)]
        # Recurrent update as VPU broadcast-FMAs (Z=4): avoids a serial MXU
        # push/pop round trip per step on v5e/v6e; cheap everywhere at Z=4.
        for j in range(Z):
            hj = h[:, j:j + 1]                             # [B, 1]
            for g in range(4):
                pre[g] = pre[g] + hj * whh_rows[g][j]
        i_g = jax.nn.sigmoid(pre[0])
        f_g = jax.nn.sigmoid(pre[1])
        o_g = jax.nn.sigmoid(pre[2])
        g_g = jnp.tanh(pre[3])
        c = f_g * c + i_g * g_g
        h = o_g * jnp.tanh(c)

    # ---- MLP head (everything stays in vregs / VMEM) ------------------------
    # Layer 0: static-feature term precomputed; only the LSTM part remains.
    y = y1s_ref[...] + jnp.dot(h, rd(1), preferred_element_type=jnp.float32)
    y = jnp.maximum(y, 0.0) * rd(2) + rd(3)                # ReLU + folded BN
    k = 4
    for _ in range(n_hidden - 1):
        w, b, s, sh = rd(k), rd(k + 1), rd(k + 2), rd(k + 3)
        k += 4
        y = jnp.dot(y, w, preferred_element_type=jnp.float32) + b
        y = jnp.maximum(y, 0.0) * s + sh
    # Final Linear (no ReLU / BN). Only this [B, O] result leaves VMEM.
    out_ref[...] = (jnp.dot(y, rd(k), preferred_element_type=jnp.float32)
                    + rd(k + 1))


# ----------------------------------------------------------------------------
# One-time parameter folding (runs OUTSIDE the per-call jit).
# ----------------------------------------------------------------------------
def _pack_slab(entries, align=8):
    """Pack small 2-D weights into one [R, L] slab; return (slab, slots)."""
    lmax = max(int(a.shape[1]) for a in entries)
    slots, rows, off = [], [], 0
    for a in entries:
        a = jnp.asarray(a, jnp.float32)
        r, cc = int(a.shape[0]), int(a.shape[1])
        slots.append((off, r, cc))
        rows.append(jnp.pad(a, ((0, 0), (0, lmax - cc))))
        off += r
        pad = (-off) % align                 # keep blocks sublane-aligned
        if pad:
            rows.append(jnp.zeros((pad, lmax), jnp.float32))
            off += pad
    return jnp.concatenate(rows, axis=0), tuple(slots)


def prepare_params(params):
    Z = int(params["w_hh"].shape[1])

    def reorder(w):  # PyTorch gate order (i, f, g, o) -> (i, f, o, g)
        return jnp.concatenate([w[:2 * Z], w[3 * Z:], w[2 * Z:3 * Z]], axis=0)

    w_ih_r = reorder(params["w_ih"])                       # [4Z, H]
    w_hh_r = reorder(params["w_hh"])                       # [4Z, Z]
    b_r = reorder(params["b_lstm"])                        # [4Z]

    # Fold W_ih + biases straight into the sequence-embedding table.
    proj_table = params["seq_emb"] @ w_ih_r.T + b_r[None, :]   # [vocab, 4Z]

    # Gate-major recurrent weights: whh_gm[g*Z + j, k] = w_hh_r[g*Z + k, j]
    whh_gm = w_hh_r.reshape(4, Z, Z).transpose(0, 2, 1).reshape(4 * Z, Z)

    # Inference BN fold of the numerical column.
    bn = params["bn_num"]
    ns = bn["gamma"] * jax.lax.rsqrt(bn["var"] + _BN_EPS)
    nt = bn["beta"] - bn["mean"] * ns
    n_num = int(bn["gamma"].shape[0])

    mlp = params["mlp"]
    hidden, final = mlp[:-1], mlp[-1]
    w1t = hidden[0]["w"].T                 # [F_cat + n_num + Z, D1]

    # Split first Linear by feature group (torch.cat order: emb..., num, lstm)
    # and pre-multiply the categorical-embedding / numerical rows.
    off = 0
    cat_proj = []
    for tbl in params["cat_emb"]:
        nf = int(tbl.shape[1])
        cat_proj.append(tbl @ w1t[off:off + nf])           # [ni, D1]
        off += nf
    w1_num = w1t[off:off + n_num]                          # [n_num, D1]
    off += n_num
    w1_l = w1t[off:off + Z]                                # [Z, D1]

    w_num_eff = ns[:, None] * w1_num                       # BN scale folded
    b_eff = hidden[0]["b"][None, :] + nt[None, :] @ w1_num  # b1 + BN shift
    cat_proj[0] = cat_proj[0] + b_eff                      # fold into table 0

    def bn_fold(layer):
        s = layer["gamma"] * jax.lax.rsqrt(layer["var"] + _BN_EPS)
        t = layer["beta"] - layer["mean"] * s
        return s[None, :], t[None, :]

    s1, sh1 = bn_fold(hidden[0])
    entries = [whh_gm, w1_l, s1, sh1]
    for layer in hidden[1:]:
        s, sh = bn_fold(layer)
        entries += [layer["w"].T, layer["b"][None, :], s, sh]
    entries += [final["w"].T, final["b"][None, :]]
    slab, slots = _pack_slab(entries)

    bufs = dict(
        proj_table=jnp.asarray(proj_table, jnp.float32),
        cat_proj=tuple(jnp.asarray(c, jnp.float32) for c in cat_proj),
        w_num_eff=jnp.asarray(w_num_eff, jnp.float32),
        slab=slab,
    )
    meta = dict(Z=Z, slots=slots, n_hidden=len(hidden))
    return bufs, meta


# ----------------------------------------------------------------------------
# Per-call forward: only gathers + one pallas_call (everything else is folded).
# ----------------------------------------------------------------------------
def _forward(bufs, x, *, Z, slots, n_hidden):
    x = x.astype(jnp.float32)
    B = x.shape[0]
    n_cat = len(bufs["cat_proj"])
    n_num = bufs["w_num_eff"].shape[0]

    x_num = x[:, n_cat:n_cat + n_num]                       # [B, n_num]
    seq_ids = x[:, n_cat + n_num:].astype(jnp.int32)        # [B, T]
    T = seq_ids.shape[1]

    # Static-feature part of the first-layer pre-activation (b1/BN folded).
    # NOTE: jnp.take clamps out-of-range ids under jit (PyTorch would error).
    y1s = jnp.dot(x_num, bufs["w_num_eff"])
    for i in range(n_cat):
        ids = x[:, i].astype(jnp.int32)
        y1s = y1s + jnp.take(bufs["cat_proj"][i], ids, axis=0)   # [B, D1]

    # Gate-major projected sequence inputs: [T, 4B, Z]
    xw = jnp.take(bufs["proj_table"], seq_ids.T, axis=0)         # [T, B, 4Z]
    xw = xw.reshape(T, B, 4, Z).transpose(0, 2, 1, 3).reshape(T, 4 * B, Z)

    out_dim = slots[-1][2]
    kern = functools.partial(fused_forward_kernel, Z=Z, slots=slots,
                             n_hidden=n_hidden)
    # TODO(synk): for large B, add a grid over the batch with
    # dimension_semantics=("parallel",) (v7x 2-TC split + VMEM cap); gridless
    # whole-array VMEM specs are best at these tiny sizes (3 input DMAs total).
    return pl.pallas_call(
        kern,
        out_shape=jax.ShapeDtypeStruct((B, out_dim), jnp.float32),
        in_specs=[VMEM_SPEC, VMEM_SPEC, VMEM_SPEC],
        out_specs=VMEM_SPEC,
    )(xw, y1s, bufs["slab"])


def make_forward(params):
    """Fold weights once; return a jitted forward of x only."""
    bufs, meta = prepare_params(params)
    fwd = jax.jit(functools.partial(_forward, **meta))
    return functools.partial(fwd, bufs)


# ----------------------------------------------------------------------------
# Parameter init (deterministic, shapes per LSTM_iqvia.__init__)
# ----------------------------------------------------------------------------
def init_params(key, embedding_size, num_numerical_cols, output_size, layers,
                vocab_diag=941 + 1, lstm_hidden=2, lstm_z=4):
    def nxt():
        nonlocal key
        key, sub = jax.random.split(key)
        return sub

    p = {}
    p["cat_emb"] = [jax.random.normal(nxt(), (ni, nf), jnp.float32)
                    for (ni, nf) in embedding_size]
    p["bn_num"] = dict(
        gamma=jnp.ones((num_numerical_cols,), jnp.float32),
        beta=jnp.zeros((num_numerical_cols,), jnp.float32),
        mean=jnp.zeros((num_numerical_cols,), jnp.float32),
        var=jnp.ones((num_numerical_cols,), jnp.float32))

    # LSTM_embed: Embedding(vocab_diag, hidden_dim=2), LSTM(2 -> z_dim=4)
    p["seq_emb"] = jax.random.normal(nxt(), (vocab_diag, lstm_hidden),
                                     jnp.float32)
    k = 1.0 / jnp.sqrt(jnp.float32(lstm_z))
    p["w_ih"] = jax.random.uniform(nxt(), (4 * lstm_z, lstm_hidden),
                                   jnp.float32, -k, k)
    p["w_hh"] = jax.random.uniform(nxt(), (4 * lstm_z, lstm_z),
                                   jnp.float32, -k, k)
    b_ih = jax.random.uniform(nxt(), (4 * lstm_z,), jnp.float32, -k, k)
    b_hh = jax.random.uniform(nxt(), (4 * lstm_z,), jnp.float32, -k, k)
    p["b_lstm"] = b_ih + b_hh

    # MLP head: [Linear, ReLU, BatchNorm1d, Dropout] * len(layers) + Linear
    num_categorical = sum(nf for _, nf in embedding_size)
    in_dim = num_categorical + num_numerical_cols + lstm_z
    mlp = []
    for d in layers:
        kw = 1.0 / jnp.sqrt(jnp.float32(in_dim))
        mlp.append(dict(
            w=jax.random.uniform(nxt(), (d, in_dim), jnp.float32, -kw, kw),
            b=jax.random.uniform(nxt(), (d,), jnp.float32, -kw, kw),
            gamma=jnp.ones((d,), jnp.float32),
            beta=jnp.zeros((d,), jnp.float32),
            mean=jnp.zeros((d,), jnp.float32),
            var=jnp.ones((d,), jnp.float32)))
        in_dim = d
    kw = 1.0 / jnp.sqrt(jnp.float32(in_dim))
    mlp.append(dict(
        w=jax.random.uniform(nxt(), (output_size, in_dim), jnp.float32,
                             -kw, kw),
        b=jax.random.uniform(nxt(), (output_size,), jnp.float32, -kw, kw)))
    p["mlp"] = mlp
    return p


if __name__ == "__main__":
    key = jax.random.PRNGKey(0)

    embedding_size = [(5, 3), (7, 3)]   # -> num_categorical_cols = 6
    num_numerical_cols = 1              # forward uses x[:, 2:3]
    output_size = 2
    layers = [32, 16]
    B, T = 8, 8
    vocab_diag = 941 + 1

    kp, k1, k2, k3, k4 = jax.random.split(key, 5)
    params = init_params(kp, embedding_size, num_numerical_cols, output_size,
                         layers, vocab_diag=vocab_diag)

    cat0 = jax.random.randint(k1, (B, 1), 0, embedding_size[0][0])
    cat1 = jax.random.randint(k2, (B, 1), 0, embedding_size[1][0])
    num = jax.random.normal(k3, (B, 1), jnp.float32)
    seq = jax.random.randint(k4, (B, T), 0, vocab_diag)

    x = jnp.concatenate(
        [cat0.astype(jnp.float32), cat1.astype(jnp.float32), num,
         seq.astype(jnp.float32)], axis=1)  # [B, 2 + 1 + T] = [8, 11]

    forward = make_forward(params)          # one-time weight folding
    out = forward(x)
    jax.block_until_ready(out)
    assert out.shape == (B, output_size)
    print("KERNEL_OK")
</pallas_src>

<mosaic_0001>
module attributes {stable_mosaic.version = 11 : i64} {
  func.func @fused_forward_kernel(%arg0: memref<8x32x4xf32, #tpu.memory_space<vmem>>, %arg1: memref<8x32xf32, #tpu.memory_space<vmem>>, %arg2: memref<120x32xf32, #tpu.memory_space<vmem>>, %arg3: memref<8x2xf32, #tpu.memory_space<vmem>>) attributes {dimension_semantics = [], scalar_prefetch = 0 : i64, scratch_operands = 0 : i64, tpu.core_type = #tpu.core_type<tc>} {
    %c0 = arith.constant 0 : index
    %c0_0 = arith.constant 0 : index
    %0 = vector.load %arg2[%c0, %c0_0] : memref<120x32xf32, #tpu.memory_space<vmem>>, vector<16x4xf32>
    %1 = vector.extract_strided_slice %0 {offsets = [0, 0], sizes = [1, 4], strides = [1, 1]} : vector<16x4xf32> to vector<1x4xf32>
    %2 = vector.extract_strided_slice %0 {offsets = [1, 0], sizes = [1, 4], strides = [1, 1]} : vector<16x4xf32> to vector<1x4xf32>
    %3 = vector.extract_strided_slice %0 {offsets = [2, 0], sizes = [1, 4], strides = [1, 1]} : vector<16x4xf32> to vector<1x4xf32>
    %4 = vector.extract_strided_slice %0 {offsets = [3, 0], sizes = [1, 4], strides = [1, 1]} : vector<16x4xf32> to vector<1x4xf32>
    %5 = vector.extract_strided_slice %0 {offsets = [4, 0], sizes = [1, 4], strides = [1, 1]} : vector<16x4xf32> to vector<1x4xf32>
    %6 = vector.extract_strided_slice %0 {offsets = [5, 0], sizes = [1, 4], strides = [1, 1]} : vector<16x4xf32> to vector<1x4xf32>
    %7 = vector.extract_strided_slice %0 {offsets = [6, 0], sizes = [1, 4], strides = [1, 1]} : vector<16x4xf32> to vector<1x4xf32>
    %8 = vector.extract_strided_slice %0 {offsets = [7, 0], sizes = [1, 4], strides = [1, 1]} : vector<16x4xf32> to vector<1x4xf32>
    %9 = vector.extract_strided_slice %0 {offsets = [8, 0], sizes = [1, 4], strides = [1, 1]} : vector<16x4xf32> to vector<1x4xf32>
    %10 = vector.extract_strided_slice %0 {offsets = [9, 0], sizes = [1, 4], strides = [1, 1]} : vector<16x4xf32> to vector<1x4xf32>
    %11 = vector.extract_strided_slice %0 {offsets = [10, 0], sizes = [1, 4], strides = [1, 1]} : vector<16x4xf32> to vector<1x4xf32>
    %12 = vector.extract_strided_slice %0 {offsets = [11, 0], sizes = [1, 4], strides = [1, 1]} : vector<16x4xf32> to vector<1x4xf32>
    %13 = vector.extract_strided_slice %0 {offsets = [12, 0], sizes = [1, 4], strides = [1, 1]} : vector<16x4xf32> to vector<1x4xf32>
    %14 = vector.extract_strided_slice %0 {offsets = [13, 0], sizes = [1, 4], strides = [1, 1]} : vector<16x4xf32> to vector<1x4xf32>
    %15 = vector.extract_strided_slice %0 {offsets = [14, 0], sizes = [1, 4], strides = [1, 1]} : vector<16x4xf32> to vector<1x4xf32>
    %16 = vector.extract_strided_slice %0 {offsets = [15, 0], sizes = [1, 4], strides = [1, 1]} : vector<16x4xf32> to vector<1x4xf32>
    %cst = arith.constant 0.000000e+00 : f32
    %17 = vector.broadcast %cst : f32 to vector<8x4xf32>
    %cst_1 = arith.constant 0.000000e+00 : f32
    %18 = vector.broadcast %cst_1 : f32 to vector<8x4xf32>
    %c0_2 = arith.constant 0 : index
    %c0_3 = arith.constant 0 : index
    %c0_4 = arith.constant 0 : index
    %19 = vector.load %arg0[%c0_2, %c0_3, %c0_4] : memref<8x32x4xf32, #tpu.memory_space<vmem>>, vector<1x32x4xf32>
    %20 = vector.shape_cast %19 : vector<1x32x4xf32> to vector<32x4xf32>
    %21 = vector.extract_strided_slice %20 {offsets = [0, 0], sizes = [8, 4], strides = [1, 1]} : vector<32x4xf32> to vector<8x4xf32>
    %22 = vector.extract_strided_slice %20 {offsets = [8, 0], sizes = [8, 4], strides = [1, 1]} : vector<32x4xf32> to vector<8x4xf32>
    %23 = vector.extract_strided_slice %20 {offsets = [16, 0], sizes = [8, 4], strides = [1, 1]} : vector<32x4xf32> to vector<8x4xf32>
    %24 = vector.extract_strided_slice %20 {offsets = [24, 0], sizes = [8, 4], strides = [1, 1]} : vector<32x4xf32> to vector<8x4xf32>
    %25 = vector.extract_strided_slice %17 {offsets = [0, 0], sizes = [8, 1], strides = [1, 1]} : vector<8x4xf32> to vector<8x1xf32>
    %26 = vector.broadcast %25 : vector<8x1xf32> to vector<8x4xf32>
    %27 = vector.broadcast %1 : vector<1x4xf32> to vector<8x4xf32>
    %28 = arith.mulf %26, %27 : vector<8x4xf32>
    %29 = arith.addf %21, %28 : vector<8x4xf32>
    %30 = vector.broadcast %25 : vector<8x1xf32> to vector<8x4xf32>
    %31 = vector.broadcast %5 : vector<1x4xf32> to vector<8x4xf32>
    %32 = arith.mulf %30, %31 : vector<8x4xf32>
    %33 = arith.addf %22, %32 : vector<8x4xf32>
    %34 = vector.broadcast %25 : vector<8x1xf32> to vector<8x4xf32>
    %35 = vector.broadcast %9 : vector<1x4xf32> to vector<8x4xf32>
    %36 = arith.mulf %34, %35 : vector<8x4xf32>
    %37 = arith.addf %23, %36 : vector<8x4xf32>
    %38 = vector.broadcast %25 : vector<8x1xf32> to vector<8x4xf32>
    %39 = vector.broadcast %13 : vector<1x4xf32> to vector<8x4xf32>
    %40 = arith.mulf %38, %39 : vector<8x4xf32>
    %41 = arith.addf %24, %40 : vector<8x4xf32>
    %42 = vector.extract_strided_slice %17 {offsets = [0, 1], sizes = [8, 1], strides = [1, 1]} : vector<8x4xf32> to vector<8x1xf32>
    %43 = vector.broadcast %42 : vector<8x1xf32> to vector<8x4xf32>
    %44 = vector.broadcast %2 : vector<1x4xf32> to vector<8x4xf32>
    %45 = arith.mulf %43, %44 : vector<8x4xf32>
    %46 = arith.addf %29, %45 : vector<8x4xf32>
    %47 = vector.broadcast %42 : vector<8x1xf32> to vector<8x4xf32>
    %48 = vector.broadcast %6 : vector<1x4xf32> to vector<8x4xf32>
    %49 = arith.mulf %47, %48 : vector<8x4xf32>
    %50 = arith.addf %33, %49 : vector<8x4xf32>
    %51 = vector.broadcast %42 : vector<8x1xf32> to vector<8x4xf32>
    %52 = vector.broadcast %10 : vector<1x4xf32> to vector<8x4xf32>
    %53 = arith.mulf %51, %52 : vector<8x4xf32>
    %54 = arith.addf %37, %53 : vector<8x4xf32>
    %55 = vector.broadcast %42 : vector<8x1xf32> to vector<8x4xf32>
    %56 = vector.broadcast %14 : vector<1x4xf32> to vector<8x4xf32>
    %57 = arith.mulf %55, %56 : vector<8x4xf32>
    %58 = arith.addf %41, %57 : vector<8x4xf32>
    %59 = vector.extract_strided_slice %17 {offsets = [0, 2], sizes = [8, 1], strides = [1, 1]} : vector<8x4xf32> to vector<8x1xf32>
    %60 = vector.broadcast %59 : vector<8x1xf32> to vector<8x4xf32>
    %61 = vector.broadcast %3 : vector<1x4xf32> to vector<8x4xf32>
    %62 = arith.mulf %60, %61 : vector<8x4xf32>
    %63 = arith.addf %46, %62 : vector<8x4xf32>
    %64 = vector.broadcast %59 : vector<8x1xf32> to vector<8x4xf32>
    %65 = vector.broadcast %7 : vector<1x4xf32> to vector<8x4xf32>
    %66 = arith.mulf %64, %65 : vector<8x4xf32>
    %67 = arith.addf %50, %66 : vector<8x4xf32>
    %68 = vector.broadcast %59 : vector<8x1xf32> to vector<8x4xf32>
    %69 = vector.broadcast %11 : vector<1x4xf32> to vector<8x4xf32>
    %70 = arith.mulf %68, %69 : vector<8x4xf32>
    %71 = arith.addf %54, %70 : vector<8x4xf32>
    %72 = vector.broadcast %59 : vector<8x1xf32> to vector<8x4xf32>
    %73 = vector.broadcast %15 : vector<1x4xf32> to vector<8x4xf32>
    %74 = arith.mulf %72, %73 : vector<8x4xf32>
    %75 = arith.addf %58, %74 : vector<8x4xf32>
    %76 = vector.extract_strided_slice %17 {offsets = [0, 3], sizes = [8, 1], strides = [1, 1]} : vector<8x4xf32> to vector<8x1xf32>
    %77 = vector.broadcast %76 : vector<8x1xf32> to vector<8x4xf32>
    %78 = vector.broadcast %4 : vector<1x4xf32> to vector<8x4xf32>
    %79 = arith.mulf %77, %78 : vector<8x4xf32>
    %80 = arith.addf %63, %79 : vector<8x4xf32>
    %81 = vector.broadcast %76 : vector<8x1xf32> to vector<8x4xf32>
    %82 = vector.broadcast %8 : vector<1x4xf32> to vector<8x4xf32>
    %83 = arith.mulf %81, %82 : vector<8x4xf32>
    %84 = arith.addf %67, %83 : vector<8x4xf32>
    %85 = vector.broadcast %76 : vector<8x1xf32> to vector<8x4xf32>
    %86 = vector.broadcast %12 : vector<1x4xf32> to vector<8x4xf32>
    %87 = arith.mulf %85, %86 : vector<8x4xf32>
    %88 = arith.addf %71, %87 : vector<8x4xf32>
    %89 = vector.broadcast %76 : vector<8x1xf32> to vector<8x4xf32>
    %90 = vector.broadcast %16 : vector<1x4xf32> to vector<8x4xf32>
    %91 = arith.mulf %89, %90 : vector<8x4xf32>
    %92 = arith.addf %75, %91 : vector<8x4xf32>
    %93 = arith.negf %80 : vector<8x4xf32>
    %94 = math.exp %93 : vector<8x4xf32>
    %cst_5 = arith.constant 1.000000e+00 : f32
    %95 = vector.broadcast %cst_5 : f32 to vector<8x4xf32>
    %96 = arith.addf %95, %94 : vector<8x4xf32>
    %97 = arith.divf %95, %96 : vector<8x4xf32>
    %98 = arith.negf %84 : vector<8x4xf32>
    %99 = math.exp %98 : vector<8x4xf32>
    %cst_6 = arith.constant 1.000000e+00 : f32
    %100 = vector.broadcast %cst_6 : f32 to vector<8x4xf32>
    %101 = arith.addf %100, %99 : vector<8x4xf32>
    %102 = arith.divf %100, %101 : vector<8x4xf32>
    %103 = arith.negf %88 : vector<8x4xf32>
    %104 = math.exp %103 : vector<8x4xf32>
    %cst_7 = arith.constant 1.000000e+00 : f32
    %105 = vector.broadcast %cst_7 : f32 to vector<8x4xf32>
    %106 = arith.addf %105, %104 : vector<8x4xf32>
    %107 = arith.divf %105, %106 : vector<8x4xf32>
    %108 = math.tanh %92 : vector<8x4xf32>
    %109 = arith.mulf %102, %18 : vector<8x4xf32>
    %110 = arith.mulf %97, %108 : vector<8x4xf32>
    %111 = arith.addf %109, %110 : vector<8x4xf32>
    %112 = math.tanh %111 : vector<8x4xf32>
    %113 = arith.mulf %107, %112 : vector<8x4xf32>
    %c1 = arith.constant 1 : index
    %c0_8 = arith.constant 0 : index
    %c0_9 = arith.constant 0 : index
    %114 = vector.load %arg0[%c1, %c0_8, %c0_9] : memref<8x32x4xf32, #tpu.memory_space<vmem>>, vector<1x32x4xf32>
    %115 = vector.shape_cast %114 : vector<1x32x4xf32> to vector<32x4xf32>
    %116 = vector.extract_strided_slice %115 {offsets = [0, 0], sizes = [8, 4], strides = [1, 1]} : vector<32x4xf32> to vector<8x4xf32>
    %117 = vector.extract_strided_slice %115 {offsets = [8, 0], sizes = [8, 4], strides = [1, 1]} : vector<32x4xf32> to vector<8x4xf32>
    %118 = vector.extract_strided_slice %115 {offsets = [16, 0], sizes = [8, 4], strides = [1, 1]} : vector<32x4xf32> to vector<8x4xf32>
    %119 = vector.extract_strided_slice %115 {offsets = [24, 0], sizes = [8, 4], strides = [1, 1]} : vector<32x4xf32> to vector<8x4xf32>
    %120 = vector.extract_strided_slice %113 {offsets = [0, 0], sizes = [8, 1], strides = [1, 1]} : vector<8x4xf32> to vector<8x1xf32>
    %121 = vector.broadcast %120 : vector<8x1xf32> to vector<8x4xf32>
    %122 = vector.broadcast %1 : vector<1x4xf32> to vector<8x4xf32>
    %123 = arith.mulf %121, %122 : vector<8x4xf32>
    %124 = arith.addf %116, %123 : vector<8x4xf32>
    %125 = vector.broadcast %120 : vector<8x1xf32> to vector<8x4xf32>
    %126 = vector.broadcast %5 : vector<1x4xf32> to vector<8x4xf32>
    %127 = arith.mulf %125, %126 : vector<8x4xf32>
    %128 = arith.addf %117, %127 : vector<8x4xf32>
    %129 = vector.broadcast %120 : vector<8x1xf32> to vector<8x4xf32>
    %130 = vector.broadcast %9 : vector<1x4xf32> to vector<8x4xf32>
    %131 = arith.mulf %129, %130 : vector<8x4xf32>
    %132 = arith.addf %118, %131 : vector<8x4xf32>
    %133 = vector.broadcast %120 : vector<8x1xf32> to vector<8x4xf32>
    %134 = vector.broadcast %13 : vector<1x4xf32> to vector<8x4xf32>
    %135 = arith.mulf %133, %134 : vector<8x4xf32>
    %136 = arith.addf %119, %135 : vector<8x4xf32>
    %137 = vector.extract_strided_slice %113 {offsets = [0, 1], sizes = [8, 1], strides = [1, 1]} : vector<8x4xf32> to vector<8x1xf32>
    %138 = vector.broadcast %137 : vector<8x1xf32> to vector<8x4xf32>
    %139 = vector.broadcast %2 : vector<1x4xf32> to vector<8x4xf32>
    %140 = arith.mulf %138, %139 : vector<8x4xf32>
    %141 = arith.addf %124, %140 : vector<8x4xf32>
    %142 = vector.broadcast %137 : vector<8x1xf32> to vector<8x4xf32>
    %143 = vector.broadcast %6 : vector<1x4xf32> to vector<8x4xf32>
    %144 = arith.mulf %142, %143 : vector<8x4xf32>
    %145 = arith.addf %128, %144 : vector<8x4xf32>
    %146 = vector.broadcast %137 : vector<8x1xf32> to vector<8x4xf32>
    %147 = vector.broadcast %10 : vector<1x4xf32> to vector<8x4xf32>
    %148 = arith.mulf %146, %147 : vector<8x4xf32>
    %149 = arith.addf %132, %148 : vector<8x4xf32>
    %150 = vector.broadcast %137 : vector<8x1xf32> to vector<8x4xf32>
    %151 = vector.broadcast %14 : vector<1x4xf32> to vector<8x4xf32>
    %152 = arith.mulf %150, %151 : vector<8x4xf32>
    %153 = arith.addf %136, %152 : vector<8x4xf32>
    %154 = vector.extract_strided_slice %113 {offsets = [0, 2], sizes = [8, 1], strides = [1, 1]} : vector<8x4xf32> to vector<8x1xf32>
    %155 = vector.broadcast %154 : vector<8x1xf32> to vector<8x4xf32>
    %156 = vector.broadcast %3 : vector<1x4xf32> to vector<8x4xf32>
    %157 = arith.mulf %155, %156 : vector<8x4xf32>
    %158 = arith.addf %141, %157 : vector<8x4xf32>
    %159 = vector.broadcast %154 : vector<8x1xf32> to vector<8x4xf32>
    %160 = vector.broadcast %7 : vector<1x4xf32> to vector<8x4xf32>
    %161 = arith.mulf %159, %160 : vector<8x4xf32>
    %162 = arith.addf %145, %161 : vector<8x4xf32>
    %163 = vector.broadcast %154 : vector<8x1xf32> to vector<8x4xf32>
    %164 = vector.broadcast %11 : vector<1x4xf32> to vector<8x4xf32>
    %165 = arith.mulf %163, %164 : vector<8x4xf32>
    %166 = arith.addf %149, %165 : vector<8x4xf32>
    %167 = vector.broadcast %154 : vector<8x1xf32> to vector<8x4xf32>
    %168 = vector.broadcast %15 : vector<1x4xf32> to vector<8x4xf32>
    %169 = arith.mulf %167, %168 : vector<8x4xf32>
    %170 = arith.addf %153, %169 : vector<8x4xf32>
    %171 = vector.extract_strided_slice %113 {offsets = [0, 3], sizes = [8, 1], strides = [1, 1]} : vector<8x4xf32> to vector<8x1xf32>
    %172 = vector.broadcast %171 : vector<8x1xf32> to vector<8x4xf32>
    %173 = vector.broadcast %4 : vector<1x4xf32> to vector<8x4xf32>
    %174 = arith.mulf %172, %173 : vector<8x4xf32>
    %175 = arith.addf %158, %174 : vector<8x4xf32>
    %176 = vector.broadcast %171 : vector<8x1xf32> to vector<8x4xf32>
    %177 = vector.broadcast %8 : vector<1x4xf32> to vector<8x4xf32>
    %178 = arith.mulf %176, %177 : vector<8x4xf32>
    %179 = arith.addf %162, %178 : vector<8x4xf32>
    %180 = vector.broadcast %171 : vector<8x1xf32> to vector<8x4xf32>
    %181 = vector.broadcast %12 : vector<1x4xf32> to vector<8x4xf32>
    %182 = arith.mulf %180, %181 : vector<8x4xf32>
    %183 = arith.addf %166, %182 : vector<8x4xf32>
    %184 = vector.broadcast %171 : vector<8x1xf32> to vector<8x4xf32>
    %185 = vector.broadcast %16 : vector<1x4xf32> to vector<8x4xf32>
    %186 = arith.mulf %184, %185 : vector<8x4xf32>
    %187 = arith.addf %170, %186 : vector<8x4xf32>
    %188 = arith.negf %175 : vector<8x4xf32>
    %189 = math.exp %188 : vector<8x4xf32>
    %cst_10 = arith.constant 1.000000e+00 : f32
    %190 = vector.broadcast %cst_10 : f32 to vector<8x4xf32>
    %191 = arith.addf %190, %189 : vector<8x4xf32>
    %192 = arith.divf %190, %191 : vector<8x4xf32>
    %193 = arith.negf %179 : vector<8x4xf32>
    %194 = math.exp %193 : vector<8x4xf32>
    %cst_11 = arith.constant 1.000000e+00 : f32
    %195 = vector.broadcast %cst_11 : f32 to vector<8x4xf32>
    %196 = arith.addf %195, %194 : vector<8x4xf32>
    %197 = arith.divf %195, %196 : vector<8x4xf32>
    %198 = arith.negf %183 : vector<8x4xf32>
    %199 = math.exp %198 : vector<8x4xf32>
    %cst_12 = arith.constant 1.000000e+00 : f32
    %200 = vector.broadcast %cst_12 : f32 to vector<8x4xf32>
    %201 = arith.addf %200, %199 : vector<8x4xf32>
    %202 = arith.divf %200, %201 : vector<8x4xf32>
    %203 = math.tanh %187 : vector<8x4xf32>
    %204 = arith.mulf %197, %111 : vector<8x4xf32>
    %205 = arith.mulf %192, %203 : vector<8x4xf32>
    %206 = arith.addf %204, %205 : vector<8x4xf32>
    %207 = math.tanh %206 : vector<8x4xf32>
    %208 = arith.mulf %202, %207 : vector<8x4xf32>
    %c2 = arith.constant 2 : index
    %c0_13 = arith.constant 0 : index
    %c0_14 = arith.constant 0 : index
    %209 = vector.load %arg0[%c2, %c0_13, %c0_14] : memref<8x32x4xf32, #tpu.memory_space<vmem>>, vector<1x32x4xf32>
    %210 = vector.shape_cast %209 : vector<1x32x4xf32> to vector<32x4xf32>
    %211 = vector.extract_strided_slice %210 {offsets = [0, 0], sizes = [8, 4], strides = [1, 1]} : vector<32x4xf32> to vector<8x4xf32>
    %212 = vector.extract_strided_slice %210 {offsets = [8, 0], sizes = [8, 4], strides = [1, 1]} : vector<32x4xf32> to vector<8x4xf32>
    %213 = vector.extract_strided_slice %210 {offsets = [16, 0], sizes = [8, 4], strides = [1, 1]} : vector<32x4xf32> to vector<8x4xf32>
    %214 = vector.extract_strided_slice %210 {offsets = [24, 0], sizes = [8, 4], strides = [1, 1]} : vector<32x4xf32> to vector<8x4xf32>
    %215 = vector.extract_strided_slice %208 {offsets = [0, 0], sizes = [8, 1], strides = [1, 1]} : vector<8x4xf32> to vector<8x1xf32>
    %216 = vector.broadcast %215 : vector<8x1xf32> to vector<8x4xf32>
    %217 = vector.broadcast %1 : vector<1x4xf32> to vector<8x4xf32>
    %218 = arith.mulf %216, %217 : vector<8x4xf32>
    %219 = arith.addf %211, %218 : vector<8x4xf32>
    %220 = vector.broadcast %215 : vector<8x1xf32> to vector<8x4xf32>
    %221 = vector.broadcast %5 : vector<1x4xf32> to vector<8x4xf32>
    %222 = arith.mulf %220, %221 : vector<8x4xf32>
    %223 = arith.addf %212, %222 : vector<8x4xf32>
    %224 = vector.broadcast %215 : vector<8x1xf32> to vector<8x4xf32>
    %225 = vector.broadcast %9 : vector<1x4xf32> to vector<8x4xf32>
    %226 = arith.mulf %224, %225 : vector<8x4xf32>
    %227 = arith.addf %213, %226 : vector<8x4xf32>
    %228 = vector.broadcast %215 : vector<8x1xf32> to vector<8x4xf32>
    %229 = vector.broadcast %13 : vector<1x4xf32> to vector<8x4xf32>
    %230 = arith.mulf %228, %229 : vector<8x4xf32>
    %231 = arith.addf %214, %230 : vector<8x4xf32>
    %232 = vector.extract_strided_slice %208 {offsets = [0, 1], sizes = [8, 1], strides = [1, 1]} : vector<8x4xf32> to vector<8x1xf32>
    %233 = vector.broadcast %232 : vector<8x1xf32> to vector<8x4xf32>
    %234 = vector.broadcast %2 : vector<1x4xf32> to vector<8x4xf32>
    %235 = arith.mulf %233, %234 : vector<8x4xf32>
    %236 = arith.addf %219, %235 : vector<8x4xf32>
    %237 = vector.broadcast %232 : vector<8x1xf32> to vector<8x4xf32>
    %238 = vector.broadcast %6 : vector<1x4xf32> to vector<8x4xf32>
    %239 = arith.mulf %237, %238 : vector<8x4xf32>
    %240 = arith.addf %223, %239 : vector<8x4xf32>
    %241 = vector.broadcast %232 : vector<8x1xf32> to vector<8x4xf32>
    %242 = vector.broadcast %10 : vector<1x4xf32> to vector<8x4xf32>
    %243 = arith.mulf %241, %242 : vector<8x4xf32>
    %244 = arith.addf %227, %243 : vector<8x4xf32>
    %245 = vector.broadcast %232 : vector<8x1xf32> to vector<8x4xf32>
    %246 = vector.broadcast %14 : vector<1x4xf32> to vector<8x4xf32>
    %247 = arith.mulf %245, %246 : vector<8x4xf32>
    %248 = arith.addf %231, %247 : vector<8x4xf32>
    %249 = vector.extract_strided_slice %208 {offsets = [0, 2], sizes = [8, 1], strides = [1, 1]} : vector<8x4xf32> to vector<8x1xf32>
    %250 = vector.broadcast %249 : vector<8x1xf32> to vector<8x4xf32>
    %251 = vector.broadcast %3 : vector<1x4xf32> to vector<8x4xf32>
    %252 = arith.mulf %250, %251 : vector<8x4xf32>
    %253 = arith.addf %236, %252 : vector<8x4xf32>
    %254 = vector.broadcast %249 : vector<8x1xf32> to vector<8x4xf32>
    %255 = vector.broadcast %7 : vector<1x4xf32> to vector<8x4xf32>
    %256 = arith.mulf %254, %255 : vector<8x4xf32>
    %257 = arith.addf %240, %256 : vector<8x4xf32>
    %258 = vector.broadcast %249 : vector<8x1xf32> to vector<8x4xf32>
    %259 = vector.broadcast %11 : vector<1x4xf32> to vector<8x4xf32>
    %260 = arith.mulf %258, %259 : vector<8x4xf32>
    %261 = arith.addf %244, %260 : vector<8x4xf32>
    %262 = vector.broadcast %249 : vector<8x1xf32> to vector<8x4xf32>
    %263 = vector.broadcast %15 : vector<1x4xf32> to vector<8x4xf32>
    %264 = arith.mulf %262, %263 : vector<8x4xf32>
    %265 = arith.addf %248, %264 : vector<8x4xf32>
    %266 = vector.extract_strided_slice %208 {offsets = [0, 3], sizes = [8, 1], strides = [1, 1]} : vector<8x4xf32> to vector<8x1xf32>
    %267 = vector.broadcast %266 : vector<8x1xf32> to vector<8x4xf32>
    %268 = vector.broadcast %4 : vector<1x4xf32> to vector<8x4xf32>
    %269 = arith.mulf %267, %268 : vector<8x4xf32>
    %270 = arith.addf %253, %269 : vector<8x4xf32>
    %271 = vector.broadcast %266 : vector<8x1xf32> to vector<8x4xf32>
    %272 = vector.broadcast %8 : vector<1x4xf32> to vector<8x4xf32>
    %273 = arith.mulf %271, %272 : vector<8x4xf32>
    %274 = arith.addf %257, %273 : vector<8x4xf32>
    %275 = vector.broadcast %266 : vector<8x1xf32> to vector<8x4xf32>
    %276 = vector.broadcast %12 : vector<1x4xf32> to vector<8x4xf32>
    %277 = arith.mulf %275, %276 : vector<8x4xf32>
    %278 = arith.addf %261, %277 : vector<8x4xf32>
    %279 = vector.broadcast %266 : vector<8x1xf32> to vector<8x4xf32>
    %280 = vector.broadcast %16 : vector<1x4xf32> to vector<8x4xf32>
    %281 = arith.mulf %279, %280 : vector<8x4xf32>
    %282 = arith.addf %265, %281 : vector<8x4xf32>
    %283 = arith.negf %270 : vector<8x4xf32>
    %284 = math.exp %283 : vector<8x4xf32>
    %cst_15 = arith.constant 1.000000e+00 : f32
    %285 = vector.broadcast %cst_15 : f32 to vector<8x4xf32>
    %286 = arith.addf %285, %284 : vector<8x4xf32>
    %287 = arith.divf %285, %286 : vector<8x4xf32>
    %288 = arith.negf %274 : vector<8x4xf32>
    %289 = math.exp %288 : vector<8x4xf32>
    %cst_16 = arith.constant 1.000000e+00 : f32
    %290 = vector.broadcast %cst_16 : f32 to vector<8x4xf32>
    %291 = arith.addf %290, %289 : vector<8x4xf32>
    %292 = arith.divf %290, %291 : vector<8x4xf32>
    %293 = arith.negf %278 : vector<8x4xf32>
    %294 = math.exp %293 : vector<8x4xf32>
    %cst_17 = arith.constant 1.000000e+00 : f32
    %295 = vector.broadcast %cst_17 : f32 to vector<8x4xf32>
    %296 = arith.addf %295, %294 : vector<8x4xf32>
    %297 = arith.divf %295, %296 : vector<8x4xf32>
    %298 = math.tanh %282 : vector<8x4xf32>
    %299 = arith.mulf %292, %206 : vector<8x4xf32>
    %300 = arith.mulf %287, %298 : vector<8x4xf32>
    %301 = arith.addf %299, %300 : vector<8x4xf32>
    %302 = math.tanh %301 : vector<8x4xf32>
    %303 = arith.mulf %297, %302 : vector<8x4xf32>
    %c3 = arith.constant 3 : index
    %c0_18 = arith.constant 0 : index
    %c0_19 = arith.constant 0 : index
    %304 = vector.load %arg0[%c3, %c0_18, %c0_19] : memref<8x32x4xf32, #tpu.memory_space<vmem>>, vector<1x32x4xf32>
    %305 = vector.shape_cast %304 : vector<1x32x4xf32> to vector<32x4xf32>
    %306 = vector.extract_strided_slice %305 {offsets = [0, 0], sizes = [8, 4], strides = [1, 1]} : vector<32x4xf32> to vector<8x4xf32>
    %307 = vector.extract_strided_slice %305 {offsets = [8, 0], sizes = [8, 4], strides = [1, 1]} : vector<32x4xf32> to vector<8x4xf32>
    %308 = vector.extract_strided_slice %305 {offsets = [16, 0], sizes = [8, 4], strides = [1, 1]} : vector<32x4xf32> to vector<8x4xf32>
    %309 = vector.extract_strided_slice %305 {offsets = [24, 0], sizes = [8, 4], strides = [1, 1]} : vector<32x4xf32> to vector<8x4xf32>
    %310 = vector.extract_strided_slice %303 {offsets = [0, 0], sizes = [8, 1], strides = [1, 1]} : vector<8x4xf32> to vector<8x1xf32>
    %311 = vector.broadcast %310 : vector<8x1xf32> to vector<8x4xf32>
    %312 = vector.broadcast %1 : vector<1x4xf32> to vector<8x4xf32>
    %313 = arith.mulf %311, %312 : vector<8x4xf32>
    %314 = arith.addf %306, %313 : vector<8x4xf32>
    %315 = vector.broadcast %310 : vector<8x1xf32> to vector<8x4xf32>
    %316 = vector.broadcast %5 : vector<1x4xf32> to vector<8x4xf32>
    %317 = arith.mulf %315, %316 : vector<8x4xf32>
    %318 = arith.addf %307, %317 : vector<8x4xf32>
    %319 = vector.broadcast %310 : vector<8x1xf32> to vector<8x4xf32>
    %320 = vector.broadcast %9 : vector<1x4xf32> to vector<8x4xf32>
    %321 = arith.mulf %319, %320 : vector<8x4xf32>
    %322 = arith.addf %308, %321 : vector<8x4xf32>
    %323 = vector.broadcast %310 : vector<8x1xf32> to vector<8x4xf32>
    %324 = vector.broadcast %13 : vector<1x4xf32> to vector<8x4xf32>
    %325 = arith.mulf %323, %324 : vector<8x4xf32>
    %326 = arith.addf %309, %325 : vector<8x4xf32>
    %327 = vector.extract_strided_slice %303 {offsets = [0, 1], sizes = [8, 1], strides = [1, 1]} : vector<8x4xf32> to vector<8x1xf32>
    %328 = vector.broadcast %327 : vector<8x1xf32> to vector<8x4xf32>
    %329 = vector.broadcast %2 : vector<1x4xf32> to vector<8x4xf32>
    %330 = arith.mulf %328, %329 : vector<8x4xf32>
    %331 = arith.addf %314, %330 : vector<8x4xf32>
    %332 = vector.broadcast %327 : vector<8x1xf32> to vector<8x4xf32>
    %333 = vector.broadcast %6 : vector<1x4xf32> to vector<8x4xf32>
    %334 = arith.mulf %332, %333 : vector<8x4xf32>
    %335 = arith.addf %318, %334 : vector<8x4xf32>
    %336 = vector.broadcast %327 : vector<8x1xf32> to vector<8x4xf32>
    %337 = vector.broadcast %10 : vector<1x4xf32> to vector<8x4xf32>
    %338 = arith.mulf %336, %337 : vector<8x4xf32>
    %339 = arith.addf %322, %338 : vector<8x4xf32>
    %340 = vector.broadcast %327 : vector<8x1xf32> to vector<8x4xf32>
    %341 = vector.broadcast %14 : vector<1x4xf32> to vector<8x4xf32>
    %342 = arith.mulf %340, %341 : vector<8x4xf32>
    %343 = arith.addf %326, %342 : vector<8x4xf32>
    %344 = vector.extract_strided_slice %303 {offsets = [0, 2], sizes = [8, 1], strides = [1, 1]} : vector<8x4xf32> to vector<8x1xf32>
    %345 = vector.broadcast %344 : vector<8x1xf32> to vector<8x4xf32>
    %346 = vector.broadcast %3 : vector<1x4xf32> to vector<8x4xf32>
    %347 = arith.mulf %345, %346 : vector<8x4xf32>
    %348 = arith.addf %331, %347 : vector<8x4xf32>
    %349 = vector.broadcast %344 : vector<8x1xf32> to vector<8x4xf32>
    %350 = vector.broadcast %7 : vector<1x4xf32> to vector<8x4xf32>
    %351 = arith.mulf %349, %350 : vector<8x4xf32>
    %352 = arith.addf %335, %351 : vector<8x4xf32>
    %353 = vector.broadcast %344 : vector<8x1xf32> to vector<8x4xf32>
    %354 = vector.broadcast %11 : vector<1x4xf32> to vector<8x4xf32>
    %355 = arith.mulf %353, %354 : vector<8x4xf32>
    %356 = arith.addf %339, %355 : vector<8x4xf32>
    %357 = vector.broadcast %344 : vector<8x1xf32> to vector<8x4xf32>
    %358 = vector.broadcast %15 : vector<1x4xf32> to vector<8x4xf32>
    %359 = arith.mulf %357, %358 : vector<8x4xf32>
    %360 = arith.addf %343, %359 : vector<8x4xf32>
    %361 = vector.extract_strided_slice %303 {offsets = [0, 3], sizes = [8, 1], strides = [1, 1]} : vector<8x4xf32> to vector<8x1xf32>
    %362 = vector.broadcast %361 : vector<8x1xf32> to vector<8x4xf32>
    %363 = vector.broadcast %4 : vector<1x4xf32> to vector<8x4xf32>
    %364 = arith.mulf %362, %363 : vector<8x4xf32>
    %365 = arith.addf %348, %364 : vector<8x4xf32>
    %366 = vector.broadcast %361 : vector<8x1xf32> to vector<8x4xf32>
    %367 = vector.broadcast %8 : vector<1x4xf32> to vector<8x4xf32>
    %368 = arith.mulf %366, %367 : vector<8x4xf32>
    %369 = arith.addf %352, %368 : vector<8x4xf32>
    %370 = vector.broadcast %361 : vector<8x1xf32> to vector<8x4xf32>
    %371 = vector.broadcast %12 : vector<1x4xf32> to vector<8x4xf32>
    %372 = arith.mulf %370, %371 : vector<8x4xf32>
    %373 = arith.addf %356, %372 : vector<8x4xf32>
    %374 = vector.broadcast %361 : vector<8x1xf32> to vector<8x4xf32>
    %375 = vector.broadcast %16 : vector<1x4xf32> to vector<8x4xf32>
    %376 = arith.mulf %374, %375 : vector<8x4xf32>
    %377 = arith.addf %360, %376 : vector<8x4xf32>
    %378 = arith.negf %365 : vector<8x4xf32>
    %379 = math.exp %378 : vector<8x4xf32>
    %cst_20 = arith.constant 1.000000e+00 : f32
    %380 = vector.broadcast %cst_20 : f32 to vector<8x4xf32>
    %381 = arith.addf %380, %379 : vector<8x4xf32>
    %382 = arith.divf %380, %381 : vector<8x4xf32>
    %383 = arith.negf %369 : vector<8x4xf32>
    %384 = math.exp %383 : vector<8x4xf32>
    %cst_21 = arith.constant 1.000000e+00 : f32
    %385 = vector.broadcast %cst_21 : f32 to vector<8x4xf32>
    %386 = arith.addf %385, %384 : vector<8x4xf32>
    %387 = arith.divf %385, %386 : vector<8x4xf32>
    %388 = arith.negf %373 : vector<8x4xf32>
    %389 = math.exp %388 : vector<8x4xf32>
    %cst_22 = arith.constant 1.000000e+00 : f32
    %390 = vector.broadcast %cst_22 : f32 to vector<8x4xf32>
    %391 = arith.addf %390, %389 : vector<8x4xf32>
    %392 = arith.divf %390, %391 : vector<8x4xf32>
    %393 = math.tanh %377 : vector<8x4xf32>
    %394 = arith.mulf %387, %301 : vector<8x4xf32>
    %395 = arith.mulf %382, %393 : vector<8x4xf32>
    %396 = arith.addf %394, %395 : vector<8x4xf32>
    %397 = math.tanh %396 : vector<8x4xf32>
    %398 = arith.mulf %392, %397 : vector<8x4xf32>
    %c4 = arith.constant 4 : index
    %c0_23 = arith.constant 0 : index
    %c0_24 = arith.constant 0 : index
    %399 = vector.load %arg0[%c4, %c0_23, %c0_24] : memref<8x32x4xf32, #tpu.memory_space<vmem>>, vector<1x32x4xf32>
    %400 = vector.shape_cast %399 : vector<1x32x4xf32> to vector<32x4xf32>
    %401 = vector.extract_strided_slice %400 {offsets = [0, 0], sizes = [8, 4], strides = [1, 1]} : vector<32x4xf32> to vector<8x4xf32>
    %402 = vector.extract_strided_slice %400 {offsets = [8, 0], sizes = [8, 4], strides = [1, 1]} : vector<32x4xf32> to vector<8x4xf32>
    %403 = vector.extract_strided_slice %400 {offsets = [16, 0], sizes = [8, 4], strides = [1, 1]} : vector<32x4xf32> to vector<8x4xf32>
    %404 = vector.extract_strided_slice %400 {offsets = [24, 0], sizes = [8, 4], strides = [1, 1]} : vector<32x4xf32> to vector<8x4xf32>
    %405 = vector.extract_strided_slice %398 {offsets = [0, 0], sizes = [8, 1], strides = [1, 1]} : vector<8x4xf32> to vector<8x1xf32>
    %406 = vector.broadcast %405 : vector<8x1xf32> to vector<8x4xf32>
    %407 = vector.broadcast %1 : vector<1x4xf32> to vector<8x4xf32>
    %408 = arith.mulf %406, %407 : vector<8x4xf32>
    %409 = arith.addf %401, %408 : vector<8x4xf32>
    %410 = vector.broadcast %405 : vector<8x1xf32> to vector<8x4xf32>
    %411 = vector.broadcast %5 : vector<1x4xf32> to vector<8x4xf32>
    %412 = arith.mulf %410, %411 : vector<8x4xf32>
    %413 = arith.addf %402, %412 : vector<8x4xf32>
    %414 = vector.broadcast %405 : vector<8x1xf32> to vector<8x4xf32>
    %415 = vector.broadcast %9 : vector<1x4xf32> to vector<8x4xf32>
    %416 = arith.mulf %414, %415 : vector<8x4xf32>
    %417 = arith.addf %403, %416 : vector<8x4xf32>
    %418 = vector.broadcast %405 : vector<8x1xf32> to vector<8x4xf32>
    %419 = vector.broadcast %13 : vector<1x4xf32> to vector<8x4xf32>
    %420 = arith.mulf %418, %419 : vector<8x4xf32>
    %421 = arith.addf %404, %420 : vector<8x4xf32>
    %422 = vector.extract_strided_slice %398 {offsets = [0, 1], sizes = [8, 1], strides = [1, 1]} : vector<8x4xf32> to vector<8x1xf32>
    %423 = vector.broadcast %422 : vector<8x1xf32> to vector<8x4xf32>
    %424 = vector.broadcast %2 : vector<1x4xf32> to vector<8x4xf32>
    %425 = arith.mulf %423, %424 : vector<8x4xf32>
    %426 = arith.addf %409, %425 : vector<8x4xf32>
    %427 = vector.broadcast %422 : vector<8x1xf32> to vector<8x4xf32>
    %428 = vector.broadcast %6 : vector<1x4xf32> to vector<8x4xf32>
    %429 = arith.mulf %427, %428 : vector<8x4xf32>
    %430 = arith.addf %413, %429 : vector<8x4xf32>
    %431 = vector.broadcast %422 : vector<8x1xf32> to vector<8x4xf32>
    %432 = vector.broadcast %10 : vector<1x4xf32> to vector<8x4xf32>
    %433 = arith.mulf %431, %432 : vector<8x4xf32>
    %434 = arith.addf %417, %433 : vector<8x4xf32>
    %435 = vector.broadcast %422 : vector<8x1xf32> to vector<8x4xf32>
    %436 = vector.broadcast %14 : vector<1x4xf32> to vector<8x4xf32>
    %437 = arith.mulf %435, %436 : vector<8x4xf32>
    %438 = arith.addf %421, %437 : vector<8x4xf32>
    %439 = vector.extract_strided_slice %398 {offsets = [0, 2], sizes = [8, 1], strides = [1, 1]} : vector<8x4xf32> to vector<8x1xf32>
    %440 = vector.broadcast %439 : vector<8x1xf32> to vector<8x4xf32>
    %441 = vector.broadcast %3 : vector<1x4xf32> to vector<8x4xf32>
    %442 = arith.mulf %440, %441 : vector<8x4xf32>
    %443 = arith.addf %426, %442 : vector<8x4xf32>
    %444 = vector.broadcast %439 : vector<8x1xf32> to vector<8x4xf32>
    %445 = vector.broadcast %7 : vector<1x4xf32> to vector<8x4xf32>
    %446 = arith.mulf %444, %445 : vector<8x4xf32>
    %447 = arith.addf %430, %446 : vector<8x4xf32>
    %448 = vector.broadcast %439 : vector<8x1xf32> to vector<8x4xf32>
    %449 = vector.broadcast %11 : vector<1x4xf32> to vector<8x4xf32>
    %450 = arith.mulf %448, %449 : vector<8x4xf32>
    %451 = arith.addf %434, %450 : vector<8x4xf32>
    %452 = vector.broadcast %439 : vector<8x1xf32> to vector<8x4xf32>
    %453 = vector.broadcast %15 : vector<1x4xf32> to vector<8x4xf32>
    %454 = arith.mulf %452, %453 : vector<8x4xf32>
    %455 = arith.addf %438, %454 : vector<8x4xf32>
    %456 = vector.extract_strided_slice %398 {offsets = [0, 3], sizes = [8, 1], strides = [1, 1]} : vector<8x4xf32> to vector<8x1xf32>
    %457 = vector.broadcast %456 : vector<8x1xf32> to vector<8x4xf32>
    %458 = vector.broadcast %4 : vector<1x4xf32> to vector<8x4xf32>
    %459 = arith.mulf %457, %458 : vector<8x4xf32>
    %460 = arith.addf %443, %459 : vector<8x4xf32>
    %461 = vector.broadcast %456 : vector<8x1xf32> to vector<8x4xf32>
    %462 = vector.broadcast %8 : vector<1x4xf32> to vector<8x4xf32>
    %463 = arith.mulf %461, %462 : vector<8x4xf32>
    %464 = arith.addf %447, %463 : vector<8x4xf32>
    %465 = vector.broadcast %456 : vector<8x1xf32> to vector<8x4xf32>
    %466 = vector.broadcast %12 : vector<1x4xf32> to vector<8x4xf32>
    %467 = arith.mulf %465, %466 : vector<8x4xf32>
    %468 = arith.addf %451, %467 : vector<8x4xf32>
    %469 = vector.broadcast %456 : vector<8x1xf32> to vector<8x4xf32>
    %470 = vector.broadcast %16 : vector<1x4xf32> to vector<8x4xf32>
    %471 = arith.mulf %469, %470 : vector<8x4xf32>
    %472 = arith.addf %455, %471 : vector<8x4xf32>
    %473 = arith.negf %460 : vector<8x4xf32>
    %474 = math.exp %473 : vector<8x4xf32>
    %cst_25 = arith.constant 1.000000e+00 : f32
    %475 = vector.broadcast %cst_25 : f32 to vector<8x4xf32>
    %476 = arith.addf %475, %474 : vector<8x4xf32>
    %477 = arith.divf %475, %476 : vector<8x4xf32>
    %478 = arith.negf %464 : vector<8x4xf32>
    %479 = math.exp %478 : vector<8x4xf32>
    %cst_26 = arith.constant 1.000000e+00 : f32
    %480 = vector.broadcast %cst_26 : f32 to vector<8x4xf32>
    %481 = arith.addf %480, %479 : vector<8x4xf32>
    %482 = arith.divf %480, %481 : vector<8x4xf32>
    %483 = arith.negf %468 : vector<8x4xf32>
    %484 = math.exp %483 : vector<8x4xf32>
    %cst_27 = arith.constant 1.000000e+00 : f32
    %485 = vector.broadcast %cst_27 : f32 to vector<8x4xf32>
    %486 = arith.addf %485, %484 : vector<8x4xf32>
    %487 = arith.divf %485, %486 : vector<8x4xf32>
    %488 = math.tanh %472 : vector<8x4xf32>
    %489 = arith.mulf %482, %396 : vector<8x4xf32>
    %490 = arith.mulf %477, %488 : vector<8x4xf32>
    %491 = arith.addf %489, %490 : vector<8x4xf32>
    %492 = math.tanh %491 : vector<8x4xf32>
    %493 = arith.mulf %487, %492 : vector<8x4xf32>
    %c5 = arith.constant 5 : index
    %c0_28 = arith.constant 0 : index
    %c0_29 = arith.constant 0 : index
    %494 = vector.load %arg0[%c5, %c0_28, %c0_29] : memref<8x32x4xf32, #tpu.memory_space<vmem>>, vector<1x32x4xf32>
    %495 = vector.shape_cast %494 : vector<1x32x4xf32> to vector<32x4xf32>
    %496 = vector.extract_strided_slice %495 {offsets = [0, 0], sizes = [8, 4], strides = [1, 1]} : vector<32x4xf32> to vector<8x4xf32>
    %497 = vector.extract_strided_slice %495 {offsets = [8, 0], sizes = [8, 4], strides = [1, 1]} : vector<32x4xf32> to vector<8x4xf32>
    %498 = vector.extract_strided_slice %495 {offsets = [16, 0], sizes = [8, 4], strides = [1, 1]} : vector<32x4xf32> to vector<8x4xf32>
    %499 = vector.extract_strided_slice %495 {offsets = [24, 0], sizes = [8, 4], strides = [1, 1]} : vector<32x4xf32> to vector<8x4xf32>
    %500 = vector.extract_strided_slice %493 {offsets = [0, 0], sizes = [8, 1], strides = [1, 1]} : vector<8x4xf32> to vector<8x1xf32>
    %501 = vector.broadcast %500 : vector<8x1xf32> to vector<8x4xf32>
    %502 = vector.broadcast %1 : vector<1x4xf32> to vector<8x4xf32>
    %503 = arith.mulf %501, %502 : vector<8x4xf32>
    %504 = arith.addf %496, %503 : vector<8x4xf32>
    %505 = vector.broadcast %500 : vector<8x1xf32> to vector<8x4xf32>
    %506 = vector.broadcast %5 : vector<1x4xf32> to vector<8x4xf32>
    %507 = arith.mulf %505, %506 : vector<8x4xf32>
    %508 = arith.addf %497, %507 : vector<8x4xf32>
    %509 = vector.broadcast %500 : vector<8x1xf32> to vector<8x4xf32>
    %510 = vector.broadcast %9 : vector<1x4xf32> to vector<8x4xf32>
    %511 = arith.mulf %509, %510 : vector<8x4xf32>
    %512 = arith.addf %498, %511 : vector<8x4xf32>
    %513 = vector.broadcast %500 : vector<8x1xf32> to vector<8x4xf32>
    %514 = vector.broadcast %13 : vector<1x4xf32> to vector<8x4xf32>
    %515 = arith.mulf %513, %514 : vector<8x4xf32>
    %516 = arith.addf %499, %515 : vector<8x4xf32>
    %517 = vector.extract_strided_slice %493 {offsets = [0, 1], sizes = [8, 1], strides = [1, 1]} : vector<8x4xf32> to vector<8x1xf32>
    %518 = vector.broadcast %517 : vector<8x1xf32> to vector<8x4xf32>
    %519 = vector.broadcast %2 : vector<1x4xf32> to vector<8x4xf32>
    %520 = arith.mulf %518, %519 : vector<8x4xf32>
    %521 = arith.addf %504, %520 : vector<8x4xf32>
    %522 = vector.broadcast %517 : vector<8x1xf32> to vector<8x4xf32>
    %523 = vector.broadcast %6 : vector<1x4xf32> to vector<8x4xf32>
    %524 = arith.mulf %522, %523 : vector<8x4xf32>
    %525 = arith.addf %508, %524 : vector<8x4xf32>
    %526 = vector.broadcast %517 : vector<8x1xf32> to vector<8x4xf32>
    %527 = vector.broadcast %10 : vector<1x4xf32> to vector<8x4xf32>
    %528 = arith.mulf %526, %527 : vector<8x4xf32>
    %529 = arith.addf %512, %528 : vector<8x4xf32>
    %530 = vector.broadcast %517 : vector<8x1xf32> to vector<8x4xf32>
    %531 = vector.broadcast %14 : vector<1x4xf32> to vector<8x4xf32>
    %532 = arith.mulf %530, %531 : vector<8x4xf32>
    %533 = arith.addf %516, %532 : vector<8x4xf32>
    %534 = vector.extract_strided_slice %493 {offsets = [0, 2], sizes = [8, 1], strides = [1, 1]} : vector<8x4xf32> to vector<8x1xf32>
    %535 = vector.broadcast %534 : vector<8x1xf32> to vector<8x4xf32>
    %536 = vector.broadcast %3 : vector<1x4xf32> to vector<8x4xf32>
    %537 = arith.mulf %535, %536 : vector<8x4xf32>
    %538 = arith.addf %521, %537 : vector<8x4xf32>
    %539 = vector.broadcast %534 : vector<8x1xf32> to vector<8x4xf32>
    %540 = vector.broadcast %7 : vector<1x4xf32> to vector<8x4xf32>
    %541 = arith.mulf %539, %540 : vector<8x4xf32>
    %542 = arith.addf %525, %541 : vector<8x4xf32>
    %543 = vector.broadcast %534 : vector<8x1xf32> to vector<8x4xf32>
    %544 = vector.broadcast %11 : vector<1x4xf32> to vector<8x4xf32>
    %545 = arith.mulf %543, %544 : vector<8x4xf32>
    %546 = arith.addf %529, %545 : vector<8x4xf32>
    %547 = vector.broadcast %534 : vector<8x1xf32> to vector<8x4xf32>
    %548 = vector.broadcast %15 : vector<1x4xf32> to vector<8x4xf32>
    %549 = arith.mulf %547, %548 : vector<8x4xf32>
    %550 = arith.addf %533, %549 : vector<8x4xf32>
    %551 = vector.extract_strided_slice %493 {offsets = [0, 3], sizes = [8, 1], strides = [1, 1]} : vector<8x4xf32> to vector<8x1xf32>
    %552 = vector.broadcast %551 : vector<8x1xf32> to vector<8x4xf32>
    %553 = vector.broadcast %4 : vector<1x4xf32> to vector<8x4xf32>
    %554 = arith.mulf %552, %553 : vector<8x4xf32>
    %555 = arith.addf %538, %554 : vector<8x4xf32>
    %556 = vector.broadcast %551 : vector<8x1xf32> to vector<8x4xf32>
    %557 = vector.broadcast %8 : vector<1x4xf32> to vector<8x4xf32>
    %558 = arith.mulf %556, %557 : vector<8x4xf32>
    %559 = arith.addf %542, %558 : vector<8x4xf32>
    %560 = vector.broadcast %551 : vector<8x1xf32> to vector<8x4xf32>
    %561 = vector.broadcast %12 : vector<1x4xf32> to vector<8x4xf32>
    %562 = arith.mulf %560, %561 : vector<8x4xf32>
    %563 = arith.addf %546, %562 : vector<8x4xf32>
    %564 = vector.broadcast %551 : vector<8x1xf32> to vector<8x4xf32>
    %565 = vector.broadcast %16 : vector<1x4xf32> to vector<8x4xf32>
    %566 = arith.mulf %564, %565 : vector<8x4xf32>
    %567 = arith.addf %550, %566 : vector<8x4xf32>
    %568 = arith.negf %555 : vector<8x4xf32>
    %569 = math.exp %568 : vector<8x4xf32>
    %cst_30 = arith.constant 1.000000e+00 : f32
    %570 = vector.broadcast %cst_30 : f32 to vector<8x4xf32>
    %571 = arith.addf %570, %569 : vector<8x4xf32>
    %572 = arith.divf %570, %571 : vector<8x4xf32>
    %573 = arith.negf %559 : vector<8x4xf32>
    %574 = math.exp %573 : vector<8x4xf32>
    %cst_31 = arith.constant 1.000000e+00 : f32
    %575 = vector.broadcast %cst_31 : f32 to vector<8x4xf32>
    %576 = arith.addf %575, %574 : vector<8x4xf32>
    %577 = arith.divf %575, %576 : vector<8x4xf32>
    %578 = arith.negf %563 : vector<8x4xf32>
    %579 = math.exp %578 : vector<8x4xf32>
    %cst_32 = arith.constant 1.000000e+00 : f32
    %580 = vector.broadcast %cst_32 : f32 to vector<8x4xf32>
    %581 = arith.addf %580, %579 : vector<8x4xf32>
    %582 = arith.divf %580, %581 : vector<8x4xf32>
    %583 = math.tanh %567 : vector<8x4xf32>
    %584 = arith.mulf %577, %491 : vector<8x4xf32>
    %585 = arith.mulf %572, %583 : vector<8x4xf32>
    %586 = arith.addf %584, %585 : vector<8x4xf32>
    %587 = math.tanh %586 : vector<8x4xf32>
    %588 = arith.mulf %582, %587 : vector<8x4xf32>
    %c6 = arith.constant 6 : index
    %c0_33 = arith.constant 0 : index
    %c0_34 = arith.constant 0 : index
    %589 = vector.load %arg0[%c6, %c0_33, %c0_34] : memref<8x32x4xf32, #tpu.memory_space<vmem>>, vector<1x32x4xf32>
    %590 = vector.shape_cast %589 : vector<1x32x4xf32> to vector<32x4xf32>
    %591 = vector.extract_strided_slice %590 {offsets = [0, 0], sizes = [8, 4], strides = [1, 1]} : vector<32x4xf32> to vector<8x4xf32>
    %592 = vector.extract_strided_slice %590 {offsets = [8, 0], sizes = [8, 4], strides = [1, 1]} : vector<32x4xf32> to vector<8x4xf32>
    %593 = vector.extract_strided_slice %590 {offsets = [16, 0], sizes = [8, 4], strides = [1, 1]} : vector<32x4xf32> to vector<8x4xf32>
    %594 = vector.extract_strided_slice %590 {offsets = [24, 0], sizes = [8, 4], strides = [1, 1]} : vector<32x4xf32> to vector<8x4xf32>
    %595 = vector.extract_strided_slice %588 {offsets = [0, 0], sizes = [8, 1], strides = [1, 1]} : vector<8x4xf32> to vector<8x1xf32>
    %596 = vector.broadcast %595 : vector<8x1xf32> to vector<8x4xf32>
    %597 = vector.broadcast %1 : vector<1x4xf32> to vector<8x4xf32>
    %598 = arith.mulf %596, %597 : vector<8x4xf32>
    %599 = arith.addf %591, %598 : vector<8x4xf32>
    %600 = vector.broadcast %595 : vector<8x1xf32> to vector<8x4xf32>
    %601 = vector.broadcast %5 : vector<1x4xf32> to vector<8x4xf32>
    %602 = arith.mulf %600, %601 : vector<8x4xf32>
    %603 = arith.addf %592, %602 : vector<8x4xf32>
    %604 = vector.broadcast %595 : vector<8x1xf32> to vector<8x4xf32>
    %605 = vector.broadcast %9 : vector<1x4xf32> to vector<8x4xf32>
    %606 = arith.mulf %604, %605 : vector<8x4xf32>
    %607 = arith.addf %593, %606 : vector<8x4xf32>
    %608 = vector.broadcast %595 : vector<8x1xf32> to vector<8x4xf32>
    %609 = vector.broadcast %13 : vector<1x4xf32> to vector<8x4xf32>
    %610 = arith.mulf %608, %609 : vector<8x4xf32>
    %611 = arith.addf %594, %610 : vector<8x4xf32>
    %612 = vector.extract_strided_slice %588 {offsets = [0, 1], sizes = [8, 1], strides = [1, 1]} : vector<8x4xf32> to vector<8x1xf32>
    %613 = vector.broadcast %612 : vector<8x1xf32> to vector<8x4xf32>
    %614 = vector.broadcast %2 : vector<1x4xf32> to vector<8x4xf32>
    %615 = arith.mulf %613, %614 : vector<8x4xf32>
    %616 = arith.addf %599, %615 : vector<8x4xf32>
    %617 = vector.broadcast %612 : vector<8x1xf32> to vector<8x4xf32>
    %618 = vector.broadcast %6 : vector<1x4xf32> to vector<8x4xf32>
    %619 = arith.mulf %617, %618 : vector<8x4xf32>
    %620 = arith.addf %603, %619 : vector<8x4xf32>
    %621 = vector.broadcast %612 : vector<8x1xf32> to vector<8x4xf32>
    %622 = vector.broadcast %10 : vector<1x4xf32> to vector<8x4xf32>
    %623 = arith.mulf %621, %622 : vector<8x4xf32>
    %624 = arith.addf %607, %623 : vector<8x4xf32>
    %625 = vector.broadcast %612 : vector<8x1xf32> to vector<8x4xf32>
    %626 = vector.broadcast %14 : vector<1x4xf32> to vector<8x4xf32>
    %627 = arith.mulf %625, %626 : vector<8x4xf32>
    %628 = arith.addf %611, %627 : vector<8x4xf32>
    %629 = vector.extract_strided_slice %588 {offsets = [0, 2], sizes = [8, 1], strides = [1, 1]} : vector<8x4xf32> to vector<8x1xf32>
    %630 = vector.broadcast %629 : vector<8x1xf32> to vector<8x4xf32>
    %631 = vector.broadcast %3 : vector<1x4xf32> to vector<8x4xf32>
    %632 = arith.mulf %630, %631 : vector<8x4xf32>
    %633 = arith.addf %616, %632 : vector<8x4xf32>
    %634 = vector.broadcast %629 : vector<8x1xf32> to vector<8x4xf32>
    %635 = vector.broadcast %7 : vector<1x4xf32> to vector<8x4xf32>
    %636 = arith.mulf %634, %635 : vector<8x4xf32>
    %637 = arith.addf %620, %636 : vector<8x4xf32>
    %638 = vector.broadcast %629 : vector<8x1xf32> to vector<8x4xf32>
    %639 = vector.broadcast %11 : vector<1x4xf32> to vector<8x4xf32>
    %640 = arith.mulf %638, %639 : vector<8x4xf32>
    %641 = arith.addf %624, %640 : vector<8x4xf32>
    %642 = vector.broadcast %629 : vector<8x1xf32> to vector<8x4xf32>
    %643 = vector.broadcast %15 : vector<1x4xf32> to vector<8x4xf32>
    %644 = arith.mulf %642, %643 : vector<8x4xf32>
    %645 = arith.addf %628, %644 : vector<8x4xf32>
    %646 = vector.extract_strided_slice %588 {offsets = [0, 3], sizes = [8, 1], strides = [1, 1]} : vector<8x4xf32> to vector<8x1xf32>
    %647 = vector.broadcast %646 : vector<8x1xf32> to vector<8x4xf32>
    %648 = vector.broadcast %4 : vector<1x4xf32> to vector<8x4xf32>
    %649 = arith.mulf %647, %648 : vector<8x4xf32>
    %650 = arith.addf %633, %649 : vector<8x4xf32>
    %651 = vector.broadcast %646 : vector<8x1xf32> to vector<8x4xf32>
    %652 = vector.broadcast %8 : vector<1x4xf32> to vector<8x4xf32>
    %653 = arith.mulf %651, %652 : vector<8x4xf32>
    %654 = arith.addf %637, %653 : vector<8x4xf32>
    %655 = vector.broadcast %646 : vector<8x1xf32> to vector<8x4xf32>
    %656 = vector.broadcast %12 : vector<1x4xf32> to vector<8x4xf32>
    %657 = arith.mulf %655, %656 : vector<8x4xf32>
    %658 = arith.addf %641, %657 : vector<8x4xf32>
    %659 = vector.broadcast %646 : vector<8x1xf32> to vector<8x4xf32>
    %660 = vector.broadcast %16 : vector<1x4xf32> to vector<8x4xf32>
    %661 = arith.mulf %659, %660 : vector<8x4xf32>
    %662 = arith.addf %645, %661 : vector<8x4xf32>
    %663 = arith.negf %650 : vector<8x4xf32>
    %664 = math.exp %663 : vector<8x4xf32>
    %cst_35 = arith.constant 1.000000e+00 : f32
    %665 = vector.broadcast %cst_35 : f32 to vector<8x4xf32>
    %666 = arith.addf %665, %664 : vector<8x4xf32>
    %667 = arith.divf %665, %666 : vector<8x4xf32>
    %668 = arith.negf %654 : vector<8x4xf32>
    %669 = math.exp %668 : vector<8x4xf32>
    %cst_36 = arith.constant 1.000000e+00 : f32
    %670 = vector.broadcast %cst_36 : f32 to vector<8x4xf32>
    %671 = arith.addf %670, %669 : vector<8x4xf32>
    %672 = arith.divf %670, %671 : vector<8x4xf32>
    %673 = arith.negf %658 : vector<8x4xf32>
    %674 = math.exp %673 : vector<8x4xf32>
    %cst_37 = arith.constant 1.000000e+00 : f32
    %675 = vector.broadcast %cst_37 : f32 to vector<8x4xf32>
    %676 = arith.addf %675, %674 : vector<8x4xf32>
    %677 = arith.divf %675, %676 : vector<8x4xf32>
    %678 = math.tanh %662 : vector<8x4xf32>
    %679 = arith.mulf %672, %586 : vector<8x4xf32>
    %680 = arith.mulf %667, %678 : vector<8x4xf32>
    %681 = arith.addf %679, %680 : vector<8x4xf32>
    %682 = math.tanh %681 : vector<8x4xf32>
    %683 = arith.mulf %677, %682 : vector<8x4xf32>
    %c7 = arith.constant 7 : index
    %c0_38 = arith.constant 0 : index
    %c0_39 = arith.constant 0 : index
    %684 = vector.load %arg0[%c7, %c0_38, %c0_39] : memref<8x32x4xf32, #tpu.memory_space<vmem>>, vector<1x32x4xf32>
    %685 = vector.shape_cast %684 : vector<1x32x4xf32> to vector<32x4xf32>
    %686 = vector.extract_strided_slice %685 {offsets = [0, 0], sizes = [8, 4], strides = [1, 1]} : vector<32x4xf32> to vector<8x4xf32>
    %687 = vector.extract_strided_slice %685 {offsets = [8, 0], sizes = [8, 4], strides = [1, 1]} : vector<32x4xf32> to vector<8x4xf32>
    %688 = vector.extract_strided_slice %685 {offsets = [16, 0], sizes = [8, 4], strides = [1, 1]} : vector<32x4xf32> to vector<8x4xf32>
    %689 = vector.extract_strided_slice %685 {offsets = [24, 0], sizes = [8, 4], strides = [1, 1]} : vector<32x4xf32> to vector<8x4xf32>
    %690 = vector.extract_strided_slice %683 {offsets = [0, 0], sizes = [8, 1], strides = [1, 1]} : vector<8x4xf32> to vector<8x1xf32>
    %691 = vector.broadcast %690 : vector<8x1xf32> to vector<8x4xf32>
    %692 = vector.broadcast %1 : vector<1x4xf32> to vector<8x4xf32>
    %693 = arith.mulf %691, %692 : vector<8x4xf32>
    %694 = arith.addf %686, %693 : vector<8x4xf32>
    %695 = vector.broadcast %690 : vector<8x1xf32> to vector<8x4xf32>
    %696 = vector.broadcast %5 : vector<1x4xf32> to vector<8x4xf32>
    %697 = arith.mulf %695, %696 : vector<8x4xf32>
    %698 = arith.addf %687, %697 : vector<8x4xf32>
    %699 = vector.broadcast %690 : vector<8x1xf32> to vector<8x4xf32>
    %700 = vector.broadcast %9 : vector<1x4xf32> to vector<8x4xf32>
    %701 = arith.mulf %699, %700 : vector<8x4xf32>
    %702 = arith.addf %688, %701 : vector<8x4xf32>
    %703 = vector.broadcast %690 : vector<8x1xf32> to vector<8x4xf32>
    %704 = vector.broadcast %13 : vector<1x4xf32> to vector<8x4xf32>
    %705 = arith.mulf %703, %704 : vector<8x4xf32>
    %706 = arith.addf %689, %705 : vector<8x4xf32>
    %707 = vector.extract_strided_slice %683 {offsets = [0, 1], sizes = [8, 1], strides = [1, 1]} : vector<8x4xf32> to vector<8x1xf32>
    %708 = vector.broadcast %707 : vector<8x1xf32> to vector<8x4xf32>
    %709 = vector.broadcast %2 : vector<1x4xf32> to vector<8x4xf32>
    %710 = arith.mulf %708, %709 : vector<8x4xf32>
    %711 = arith.addf %694, %710 : vector<8x4xf32>
    %712 = vector.broadcast %707 : vector<8x1xf32> to vector<8x4xf32>
    %713 = vector.broadcast %6 : vector<1x4xf32> to vector<8x4xf32>
    %714 = arith.mulf %712, %713 : vector<8x4xf32>
    %715 = arith.addf %698, %714 : vector<8x4xf32>
    %716 = vector.broadcast %707 : vector<8x1xf32> to vector<8x4xf32>
    %717 = vector.broadcast %10 : vector<1x4xf32> to vector<8x4xf32>
    %718 = arith.mulf %716, %717 : vector<8x4xf32>
    %719 = arith.addf %702, %718 : vector<8x4xf32>
    %720 = vector.broadcast %707 : vector<8x1xf32> to vector<8x4xf32>
    %721 = vector.broadcast %14 : vector<1x4xf32> to vector<8x4xf32>
    %722 = arith.mulf %720, %721 : vector<8x4xf32>
    %723 = arith.addf %706, %722 : vector<8x4xf32>
    %724 = vector.extract_strided_slice %683 {offsets = [0, 2], sizes = [8, 1], strides = [1, 1]} : vector<8x4xf32> to vector<8x1xf32>
    %725 = vector.broadcast %724 : vector<8x1xf32> to vector<8x4xf32>
    %726 = vector.broadcast %3 : vector<1x4xf32> to vector<8x4xf32>
    %727 = arith.mulf %725, %726 : vector<8x4xf32>
    %728 = arith.addf %711, %727 : vector<8x4xf32>
    %729 = vector.broadcast %724 : vector<8x1xf32> to vector<8x4xf32>
    %730 = vector.broadcast %7 : vector<1x4xf32> to vector<8x4xf32>
    %731 = arith.mulf %729, %730 : vector<8x4xf32>
    %732 = arith.addf %715, %731 : vector<8x4xf32>
    %733 = vector.broadcast %724 : vector<8x1xf32> to vector<8x4xf32>
    %734 = vector.broadcast %11 : vector<1x4xf32> to vector<8x4xf32>
    %735 = arith.mulf %733, %734 : vector<8x4xf32>
    %736 = arith.addf %719, %735 : vector<8x4xf32>
    %737 = vector.broadcast %724 : vector<8x1xf32> to vector<8x4xf32>
    %738 = vector.broadcast %15 : vector<1x4xf32> to vector<8x4xf32>
    %739 = arith.mulf %737, %738 : vector<8x4xf32>
    %740 = arith.addf %723, %739 : vector<8x4xf32>
    %741 = vector.extract_strided_slice %683 {offsets = [0, 3], sizes = [8, 1], strides = [1, 1]} : vector<8x4xf32> to vector<8x1xf32>
    %742 = vector.broadcast %741 : vector<8x1xf32> to vector<8x4xf32>
    %743 = vector.broadcast %4 : vector<1x4xf32> to vector<8x4xf32>
    %744 = arith.mulf %742, %743 : vector<8x4xf32>
    %745 = arith.addf %728, %744 : vector<8x4xf32>
    %746 = vector.broadcast %741 : vector<8x1xf32> to vector<8x4xf32>
    %747 = vector.broadcast %8 : vector<1x4xf32> to vector<8x4xf32>
    %748 = arith.mulf %746, %747 : vector<8x4xf32>
    %749 = arith.addf %732, %748 : vector<8x4xf32>
    %750 = vector.broadcast %741 : vector<8x1xf32> to vector<8x4xf32>
    %751 = vector.broadcast %12 : vector<1x4xf32> to vector<8x4xf32>
    %752 = arith.mulf %750, %751 : vector<8x4xf32>
    %753 = arith.addf %736, %752 : vector<8x4xf32>
    %754 = vector.broadcast %741 : vector<8x1xf32> to vector<8x4xf32>
    %755 = vector.broadcast %16 : vector<1x4xf32> to vector<8x4xf32>
    %756 = arith.mulf %754, %755 : vector<8x4xf32>
    %757 = arith.addf %740, %756 : vector<8x4xf32>
    %758 = arith.negf %745 : vector<8x4xf32>
    %759 = math.exp %758 : vector<8x4xf32>
    %cst_40 = arith.constant 1.000000e+00 : f32
    %760 = vector.broadcast %cst_40 : f32 to vector<8x4xf32>
    %761 = arith.addf %760, %759 : vector<8x4xf32>
    %762 = arith.divf %760, %761 : vector<8x4xf32>
    %763 = arith.negf %749 : vector<8x4xf32>
    %764 = math.exp %763 : vector<8x4xf32>
    %cst_41 = arith.constant 1.000000e+00 : f32
    %765 = vector.broadcast %cst_41 : f32 to vector<8x4xf32>
    %766 = arith.addf %765, %764 : vector<8x4xf32>
    %767 = arith.divf %765, %766 : vector<8x4xf32>
    %768 = arith.negf %753 : vector<8x4xf32>
    %769 = math.exp %768 : vector<8x4xf32>
    %cst_42 = arith.constant 1.000000e+00 : f32
    %770 = vector.broadcast %cst_42 : f32 to vector<8x4xf32>
    %771 = arith.addf %770, %769 : vector<8x4xf32>
    %772 = arith.divf %770, %771 : vector<8x4xf32>
    %773 = math.tanh %757 : vector<8x4xf32>
    %774 = arith.mulf %767, %681 : vector<8x4xf32>
    %775 = arith.mulf %762, %773 : vector<8x4xf32>
    %776 = arith.addf %774, %775 : vector<8x4xf32>
    %777 = math.tanh %776 : vector<8x4xf32>
    %778 = arith.mulf %772, %777 : vector<8x4xf32>
    %c0_43 = arith.constant 0 : index
    %c0_44 = arith.constant 0 : index
    %779 = vector.load %arg1[%c0_43, %c0_44] : memref<8x32xf32, #tpu.memory_space<vmem>>, vector<8x32xf32>
    %c16 = arith.constant 16 : index
    %c0_45 = arith.constant 0 : index
    %780 = vector.load %arg2[%c16, %c0_45] : memref<120x32xf32, #tpu.memory_space<vmem>>, vector<4x32xf32>
    %cst_46 = arith.constant dense<0.000000e+00> : vector<8x32xf32>
    %781 = tpu.matmul %778, %780, %cst_46 {dimension_numbers = #tpu.dot_dimension_numbers<[1], [0], [0], [1], [0, 0, 1, 1], [], []>} : vector<8x4xf32>, vector<4x32xf32>, vector<8x32xf32> -> vector<8x32xf32>
    %782 = arith.addf %779, %781 : vector<8x32xf32>
    %cst_47 = arith.constant 0.000000e+00 : f32
    %783 = vector.broadcast %cst_47 : f32 to vector<8x32xf32>
    %784 = arith.maximumf %782, %783 : vector<8x32xf32>
    %c24 = arith.constant 24 : index
    %c0_48 = arith.constant 0 : index
    %785 = vector.load %arg2[%c24, %c0_48] : memref<120x32xf32, #tpu.memory_space<vmem>>, vector<1x32xf32>
    %786 = vector.broadcast %785 : vector<1x32xf32> to vector<8x32xf32>
    %787 = arith.mulf %784, %786 : vector<8x32xf32>
    %c32 = arith.constant 32 : index
    %c0_49 = arith.constant 0 : index
    %788 = vector.load %arg2[%c32, %c0_49] : memref<120x32xf32, #tpu.memory_space<vmem>>, vector<1x32xf32>
    %789 = vector.broadcast %788 : vector<1x32xf32> to vector<8x32xf32>
    %790 = arith.addf %787, %789 : vector<8x32xf32>
    %c40 = arith.constant 40 : index
    %c0_50 = arith.constant 0 : index
    %791 = vector.load %arg2[%c40, %c0_50] : memref<120x32xf32, #tpu.memory_space<vmem>>, vector<32x16xf32>
    %c72 = arith.constant 72 : index
    %c0_51 = arith.constant 0 : index
    %792 = vector.load %arg2[%c72, %c0_51] : memref<120x32xf32, #tpu.memory_space<vmem>>, vector<1x16xf32>
    %c80 = arith.constant 80 : index
    %c0_52 = arith.constant 0 : index
    %793 = vector.load %arg2[%c80, %c0_52] : memref<120x32xf32, #tpu.memory_space<vmem>>, vector<1x16xf32>
    %c88 = arith.constant 88 : index
    %c0_53 = arith.constant 0 : index
    %794 = vector.load %arg2[%c88, %c0_53] : memref<120x32xf32, #tpu.memory_space<vmem>>, vector<1x16xf32>
    %cst_54 = arith.constant dense<0.000000e+00> : vector<8x16xf32>
    %795 = tpu.matmul %790, %791, %cst_54 {dimension_numbers = #tpu.dot_dimension_numbers<[1], [0], [0], [1], [0, 0, 1, 1], [], []>} : vector<8x32xf32>, vector<32x16xf32>, vector<8x16xf32> -> vector<8x16xf32>
    %796 = vector.broadcast %792 : vector<1x16xf32> to vector<8x16xf32>
    %797 = arith.addf %795, %796 : vector<8x16xf32>
    %cst_55 = arith.constant 0.000000e+00 : f32
    %798 = vector.broadcast %cst_55 : f32 to vector<8x16xf32>
    %799 = arith.maximumf %797, %798 : vector<8x16xf32>
    %800 = vector.broadcast %793 : vector<1x16xf32> to vector<8x16xf32>
    %801 = arith.mulf %799, %800 : vector<8x16xf32>
    %802 = vector.broadcast %794 : vector<1x16xf32> to vector<8x16xf32>
    %803 = arith.addf %801, %802 : vector<8x16xf32>
    %c96 = arith.constant 96 : index
    %c0_56 = arith.constant 0 : index
    %804 = vector.load %arg2[%c96, %c0_56] : memref<120x32xf32, #tpu.memory_space<vmem>>, vector<16x2xf32>
    %cst_57 = arith.constant dense<0.000000e+00> : vector<8x2xf32>
    %805 = tpu.matmul %803, %804, %cst_57 {dimension_numbers = #tpu.dot_dimension_numbers<[1], [0], [0], [1], [0, 0, 1, 1], [], []>} : vector<8x16xf32>, vector<16x2xf32>, vector<8x2xf32> -> vector<8x2xf32>
    %c112 = arith.constant 112 : index
    %c0_58 = arith.constant 0 : index
    %806 = vector.load %arg2[%c112, %c0_58] : memref<120x32xf32, #tpu.memory_space<vmem>>, vector<1x2xf32>
    %807 = vector.broadcast %806 : vector<1x2xf32> to vector<8x2xf32>
    %808 = arith.addf %805, %807 : vector<8x2xf32>
    %c0_59 = arith.constant 0 : index
    %c0_60 = arith.constant 0 : index
    %809 = vector.load %arg3[%c0_59, %c0_60] : memref<8x2xf32, #tpu.memory_space<vmem>>, vector<8x2xf32>
    tpu.vector_store %arg3[%c0_59, %c0_60], %808 {strides = array<i32>} : memref<8x2xf32, #tpu.memory_space<vmem>>, vector<8x2xf32>,
    return
  }
}

</mosaic_0001>

<llo_original>
// kernel: _forward.1
$region0: #{_forward.1}
  #allocation0 [shape = 'u32[]', space=smem, size = 0x4, offset = 0x4, fixed_abs, tag = 'smem constant byte address 0x4 - core index']
  #allocation1 [shape = 'u32[72,128]{1,0:T(1,128)}', space=vmem, size = 0x9000, scoped, tag = 'internal scratch']
  %s0 = inlined_call_operand.vmem [shape: f32[8,32,4], index: 0, kind: input, shape index: {}]
  %s1 = inlined_call_operand.vmem [shape: f32[8,32], index: 1, kind: input, shape index: {}]
  %s2 = inlined_call_operand.vmem [shape: f32[120,32], index: 2, kind: input, shape index: {}]
  %s3 = inlined_call_operand.vmem [shape: f32[8,2], index: 3, kind: output, shape index: {}]
  %s4 = sld [smem:[#allocation0]]
  $region22: #{_forward.1} parent=0
    _
  %s6 = ssub.s32 1, %s4
  %s7 = scalar_select 0, %s6, %s4
  // Predicated region
  $region2: #{_forward.1} parent=0 // pred_check
    _
  $region3: #{_forward.1} parent=0 // pred_check_branch
    %9 = sbr.rel (0) target = $region5
  $region4: #{_forward.1} parent=0 // pred_region
    _
  $region5: #{_forward.1} parent=0 // pred_fallthru
    _
  // Predicated region
  $region6: #{_forward.1} parent=0 // pred_check
    _
  $region7: #{_forward.1} parent=0 // pred_check_branch
    %11 = sbr.rel (0) target = $region9
  $region8: #{_forward.1} parent=0 // pred_region
    _
  $region9: #{_forward.1} parent=0 // pred_fallthru
    _
  // Predicated region
  $region10: #{_forward.1} parent=0 // pred_check
    _
  $region11: #{_forward.1} parent=0 // pred_check_branch
    %13 = sbr.rel (0) target = $region13
  $region12: #{_forward.1} parent=0 // pred_region
    _
  $region13: #{_forward.1} parent=0 // pred_fallthru
    _
  %v14 = vld [vmem:[%s2] sm:$0xff]
  %v15 = vld [vmem:[%s2 + $0x8] sm:$0xff]
  %v16 = vld [vmem:[%s0] sm:$0xff]
  %v17 = vld [vmem:[%s0 + $0x8] sm:$0xff]
  %v18 = vld [vmem:[%s0 + $0x10] sm:$0xff]
  %v19 = vld [vmem:[%s0 + $0x18] sm:$0xff]
  %v20 = vperm.slane %v14, 0
  %v21 = vmul.f32 %v20, 0.0
  %v22 = vadd.f32 %v16, %v21
  %v23 = vperm.slane %v14, 4
  %v24 = vmul.f32 %v23, 0.0
  %v25 = vadd.f32 %v17, %v24
  %v26 = vperm.slane %v15, 0
  %v27 = vmul.f32 %v26, 0.0
  %v28 = vadd.f32 %v18, %v27
  %v29 = vperm.slane %v15, 4
  %v30 = vmul.f32 %v29, 0.0
  %v31 = vadd.f32 %v19, %v30
  %v32 = vperm.slane %v14, 1
  %v33 = vmul.f32 %v32, 0.0
  %v34 = vadd.f32 %v22, %v33
  %v35 = vperm.slane %v14, 5
  %v36 = vmul.f32 %v35, 0.0
  %v37 = vadd.f32 %v25, %v36
  %v38 = vperm.slane %v15, 1
  %v39 = vmul.f32 %v38, 0.0
  %v40 = vadd.f32 %v28, %v39
  %v41 = vperm.slane %v15, 5
  %v42 = vmul.f32 %v41, 0.0
  %v43 = vadd.f32 %v31, %v42
  %v44 = vperm.slane %v14, 2
  %v45 = vmul.f32 %v44, 0.0
  %v46 = vadd.f32 %v34, %v45
  %v47 = vperm.slane %v14, 6
  %v48 = vmul.f32 %v47, 0.0
  %v49 = vadd.f32 %v37, %v48
  %v50 = vperm.slane %v15, 2
  %v51 = vmul.f32 %v50, 0.0
  %v52 = vadd.f32 %v40, %v51
  %v53 = vperm.slane %v15, 6
  %v54 = vmul.f32 %v53, 0.0
  %v55 = vadd.f32 %v43, %v54
  %v56 = vperm.slane %v14, 3
  %v57 = vmul.f32 %v56, 0.0
  %v58 = vadd.f32 %v46, %v57
  %v59 = vperm.slane %v14, 7
  %v60 = vmul.f32 %v59, 0.0
  %v61 = vadd.f32 %v49, %v60
  %v62 = vperm.slane %v15, 3
  %v63 = vmul.f32 %v62, 0.0
  %v64 = vadd.f32 %v52, %v63
  %v65 = vperm.slane %v15, 7
  %v66 = vmul.f32 %v65, 0.0
  %v67 = vadd.f32 %v55, %v66
  %v68 = vxor.u32 %v58, 2147483648
  %v69 = vmul.f32 %v68, 1.442695
  %v70 = vpow.pop %v69
  %v71 = vadd.f32 %v70, 1.0
  %v72 = vrcp.pop %v71
  %v73 = vmul.f32 %v71, %v72
  %v74 = vsub.f32 1.0, %v73
  %v75 = vmul.f32 %v72, %v74
  %v76 = vadd.f32 %v72, %v75
  %vm77 = vweird.f32 %v71
  %vm78 = vweird.f32 %v72
  %vm79 = vmor %vm77, %vm78
  %v80 = vsel %vm79, %v72, %v76
  %v81 = vand.u32 2147483647, %v71
  %vm82 = vcmp.eq.f32.partialorder %v81, 8.507059e+37
  %v83 = vand.u32 %v71, 2147483648
  %v84 = vor.u32 1.1754944e-38, %v83
  %v85 = vsel %vm82, %v84, %v80
  %v86 = vmul.f32 1.0, %v85
  %v87 = vxor.u32 %v61, 2147483648
  %v88 = vmul.f32 %v87, 1.442695
  %v89 = vpow.pop %v88
  %v90 = vadd.f32 %v89, 1.0
  %v91 = vrcp.pop %v90
  %v92 = vmul.f32 %v90, %v91
  %v93 = vsub.f32 1.0, %v92
  %v94 = vmul.f32 %v91, %v93
  %v95 = vadd.f32 %v91, %v94
  %vm96 = vweird.f32 %v90
  %vm97 = vweird.f32 %v91
  %vm98 = vmor %vm96, %vm97
  %v99 = vsel %vm98, %v91, %v95
  %v100 = vand.u32 2147483647, %v90
  %vm101 = vcmp.eq.f32.partialorder %v100, 8.507059e+37
  %v102 = vand.u32 %v90, 2147483648
  %v103 = vor.u32 1.1754944e-38, %v102
  %v104 = vsel %vm101, %v103, %v99
  %v105 = vmul.f32 1.0, %v104
  %v106 = vxor.u32 %v64, 2147483648
  %v107 = vmul.f32 %v106, 1.442695
  %v108 = vpow.pop %v107
  %v109 = vadd.f32 %v108, 1.0
  %v110 = vrcp.pop %v109
  %v111 = vmul.f32 %v109, %v110
  %v112 = vsub.f32 1.0, %v111
  %v113 = vmul.f32 %v110, %v112
  %v114 = vadd.f32 %v110, %v113
  %vm115 = vweird.f32 %v109
  %vm116 = vweird.f32 %v110
  %vm117 = vmor %vm115, %vm116
  %v118 = vsel %vm117, %v110, %v114
  %v119 = vand.u32 2147483647, %v109
  %vm120 = vcmp.eq.f32.partialorder %v119, 8.507059e+37
  %v121 = vand.u32 %v109, 2147483648
  %v122 = vor.u32 1.1754944e-38, %v121
  %v123 = vsel %vm120, %v122, %v118
  %v124 = vmul.f32 1.0, %v123
  %v125 = vtanh.pop %v67
  %v126 = vmul.f32 %v105, 0.0
  %v127 = vmul.f32 %v86, %v125
  %v128 = vadd.f32 %v126, %v127
  %v129 = vtanh.pop %v128
  %v130 = vmul.f32 %v124, %v129
  %s131 = scalar_lea.vmem %s0, 32
  %v132 = vld [vmem:[%s131] sm:$0xff]
  %v133 = vld [vmem:[%s131 + $0x8] sm:$0xff]
  %v134 = vld [vmem:[%s131 + $0x10] sm:$0xff]
  %v135 = vld [vmem:[%s131 + $0x18] sm:$0xff]
  %137 = vset.pattern.permute.xlu0 0
  %138 = vperm.xlu0 %137, %v130
  %v139 = vpop.permute.xlu0 %138
  %v141 = vmul.f32 %v139, %v20
  %v142 = vadd.f32 %v132, %v141
  %v143 = vmul.f32 %v139, %v23
  %v144 = vadd.f32 %v133, %v143
  %v145 = vmul.f32 %v139, %v26
  %v146 = vadd.f32 %v134, %v145
  %v147 = vmul.f32 %v139, %v29
  %v148 = vadd.f32 %v135, %v147
  %149 = vset.pattern.permute.xlu0 1
  %150 = vperm.xlu0 %149, %v130
  %v151 = vpop.permute.xlu0 %150
  %v153 = vmul.f32 %v151, %v32
  %v154 = vadd.f32 %v142, %v153
  %v155 = vmul.f32 %v151, %v35
  %v156 = vadd.f32 %v144, %v155
  %v157 = vmul.f32 %v151, %v38
  %v158 = vadd.f32 %v146, %v157
  %v159 = vmul.f32 %v151, %v41
  %v160 = vadd.f32 %v148, %v159
  %161 = vset.pattern.permute.xlu0 2
  %162 = vperm.xlu0 %161, %v130
  %v163 = vpop.permute.xlu0 %162
  %v165 = vmul.f32 %v163, %v44
  %v166 = vadd.f32 %v154, %v165
  %v167 = vmul.f32 %v163, %v47
  %v168 = vadd.f32 %v156, %v167
  %v169 = vmul.f32 %v163, %v50
  %v170 = vadd.f32 %v158, %v169
  %v171 = vmul.f32 %v163, %v53
  %v172 = vadd.f32 %v160, %v171
  %173 = vset.pattern.permute.xlu0 3
  %174 = vperm.xlu0 %173, %v130
  %v175 = vpop.permute.xlu0 %174
  %v177 = vmul.f32 %v175, %v56
  %v178 = vadd.f32 %v166, %v177
  %v179 = vmul.f32 %v175, %v59
  %v180 = vadd.f32 %v168, %v179
  %v181 = vmul.f32 %v175, %v62
  %v182 = vadd.f32 %v170, %v181
  %v183 = vmul.f32 %v175, %v65
  %v184 = vadd.f32 %v172, %v183
  %v185 = vxor.u32 %v178, 2147483648
  %v186 = vmul.f32 %v185, 1.442695
  %v187 = vpow.pop %v186
  %v188 = vadd.f32 %v187, 1.0
  %v189 = vrcp.pop %v188
  %v190 = vmul.f32 %v188, %v189
  %v191 = vsub.f32 1.0, %v190
  %v192 = vmul.f32 %v189, %v191
  %v193 = vadd.f32 %v189, %v192
  %vm194 = vweird.f32 %v188
  %vm195 = vweird.f32 %v189
  %vm196 = vmor %vm194, %vm195
  %v197 = vsel %vm196, %v189, %v193
  %v198 = vand.u32 2147483647, %v188
  %vm199 = vcmp.eq.f32.partialorder %v198, 8.507059e+37
  %v200 = vand.u32 %v188, 2147483648
  %v201 = vor.u32 1.1754944e-38, %v200
  %v202 = vsel %vm199, %v201, %v197
  %v203 = vmul.f32 1.0, %v202
  %v204 = vxor.u32 %v180, 2147483648
  %v205 = vmul.f32 %v204, 1.442695
  %v206 = vpow.pop %v205
  %v207 = vadd.f32 %v206, 1.0
  %v208 = vrcp.pop %v207
  %v209 = vmul.f32 %v207, %v208
  %v210 = vsub.f32 1.0, %v209
  %v211 = vmul.f32 %v208, %v210
  %v212 = vadd.f32 %v208, %v211
  %vm213 = vweird.f32 %v207
  %vm214 = vweird.f32 %v208
  %vm215 = vmor %vm213, %vm214
  %v216 = vsel %vm215, %v208, %v212
  %v217 = vand.u32 2147483647, %v207
  %vm218 = vcmp.eq.f32.partialorder %v217, 8.507059e+37
  %v219 = vand.u32 %v207, 2147483648
  %v220 = vor.u32 1.1754944e-38, %v219
  %v221 = vsel %vm218, %v220, %v216
  %v222 = vmul.f32 1.0, %v221
  %v223 = vxor.u32 %v182, 2147483648
  %v224 = vmul.f32 %v223, 1.442695
  %v225 = vpow.pop %v224
  %v226 = vadd.f32 %v225, 1.0
  %v227 = vrcp.pop %v226
  %v228 = vmul.f32 %v226, %v227
  %v229 = vsub.f32 1.0, %v228
  %v230 = vmul.f32 %v227, %v229
  %v231 = vadd.f32 %v227, %v230
  %vm232 = vweird.f32 %v226
  %vm233 = vweird.f32 %v227
  %vm234 = vmor %vm232, %vm233
  %v235 = vsel %vm234, %v227, %v231
  %v236 = vand.u32 2147483647, %v226
  %vm237 = vcmp.eq.f32.partialorder %v236, 8.507059e+37
  %v238 = vand.u32 %v226, 2147483648
  %v239 = vor.u32 1.1754944e-38, %v238
  %v240 = vsel %vm237, %v239, %v235
  %v241 = vmul.f32 1.0, %v240
  %v242 = vtanh.pop %v184
  %v243 = vmul.f32 %v222, %v128
  %v244 = vmul.f32 %v203, %v242
  %v245 = vadd.f32 %v243, %v244
  %v246 = vtanh.pop %v245
  %v247 = vmul.f32 %v241, %v246
  %s248 = scalar_lea.vmem %s0, 64
  %v249 = vld [vmem:[%s248] sm:$0xff]
  %v250 = vld [vmem:[%s248 + $0x8] sm:$0xff]
  %v251 = vld [vmem:[%s248 + $0x10] sm:$0xff]
  %v252 = vld [vmem:[%s248 + $0x18] sm:$0xff]
  %254 = vset.pattern.permute.xlu0 0
  %255 = vperm.xlu0 %254, %v247
  %v256 = vpop.permute.xlu0 %255
  %v258 = vmul.f32 %v256, %v20
  %v259 = vadd.f32 %v249, %v258
  %v260 = vmul.f32 %v256, %v23
  %v261 = vadd.f32 %v250, %v260
  %v262 = vmul.f32 %v256, %v26
  %v263 = vadd.f32 %v251, %v262
  %v264 = vmul.f32 %v256, %v29
  %v265 = vadd.f32 %v252, %v264
  %266 = vset.pattern.permute.xlu0 1
  %267 = vperm.xlu0 %266, %v247
  %v268 = vpop.permute.xlu0 %267
  %v270 = vmul.f32 %v268, %v32
  %v271 = vadd.f32 %v259, %v270
  %v272 = vmul.f32 %v268, %v35
  %v273 = vadd.f32 %v261, %v272
  %v274 = vmul.f32 %v268, %v38
  %v275 = vadd.f32 %v263, %v274
  %v276 = vmul.f32 %v268, %v41
  %v277 = vadd.f32 %v265, %v276
  %278 = vset.pattern.permute.xlu0 2
  %279 = vperm.xlu0 %278, %v247
  %v280 = vpop.permute.xlu0 %279
  %v282 = vmul.f32 %v280, %v44
  %v283 = vadd.f32 %v271, %v282
  %v284 = vmul.f32 %v280, %v47
  %v285 = vadd.f32 %v273, %v284
  %v286 = vmul.f32 %v280, %v50
  %v287 = vadd.f32 %v275, %v286
  %v288 = vmul.f32 %v280, %v53
  %v289 = vadd.f32 %v277, %v288
  %290 = vset.pattern.permute.xlu0 3
  %291 = vperm.xlu0 %290, %v247
  %v292 = vpop.permute.xlu0 %291
  %v294 = vmul.f32 %v292, %v56
  %v295 = vadd.f32 %v283, %v294
  %v296 = vmul.f32 %v292, %v59
  %v297 = vadd.f32 %v285, %v296
  %v298 = vmul.f32 %v292, %v62
  %v299 = vadd.f32 %v287, %v298
  %v300 = vmul.f32 %v292, %v65
  %v301 = vadd.f32 %v289, %v300
  %v302 = vxor.u32 %v295, 2147483648
  %v303 = vmul.f32 %v302, 1.442695
  %v304 = vpow.pop %v303
  %v305 = vadd.f32 %v304, 1.0
  %v306 = vrcp.pop %v305
  %v307 = vmul.f32 %v305, %v306
  %v308 = vsub.f32 1.0, %v307
  %v309 = vmul.f32 %v306, %v308
  %v310 = vadd.f32 %v306, %v309
  %vm311 = vweird.f32 %v305
  %vm312 = vweird.f32 %v306
  %vm313 = vmor %vm311, %vm312
  %v314 = vsel %vm313, %v306, %v310
  %v315 = vand.u32 2147483647, %v305
  %vm316 = vcmp.eq.f32.partialorder %v315, 8.507059e+37
  %v317 = vand.u32 %v305, 2147483648
  %v318 = vor.u32 1.1754944e-38, %v317
  %v319 = vsel %vm316, %v318, %v314
  %v320 = vmul.f32 1.0, %v319
  %v321 = vxor.u32 %v297, 2147483648
  %v322 = vmul.f32 %v321, 1.442695
  %v323 = vpow.pop %v322
  %v324 = vadd.f32 %v323, 1.0
  %v325 = vrcp.pop %v324
  %v326 = vmul.f32 %v324, %v325
  %v327 = vsub.f32 1.0, %v326
  %v328 = vmul.f32 %v325, %v327
  %v329 = vadd.f32 %v325, %v328
  %vm330 = vweird.f32 %v324
  %vm331 = vweird.f32 %v325
  %vm332 = vmor %vm330, %vm331
  %v333 = vsel %vm332, %v325, %v329
  %v334 = vand.u32 2147483647, %v324
  %vm335 = vcmp.eq.f32.partialorder %v334, 8.507059e+37
  %v336 = vand.u32 %v324, 2147483648
  %v337 = vor.u32 1.1754944e-38, %v336
  %v338 = vsel %vm335, %v337, %v333
  %v339 = vmul.f32 1.0, %v338
  %v340 = vxor.u32 %v299, 2147483648
  %v341 = vmul.f32 %v340, 1.442695
  %v342 = vpow.pop %v341
  %v343 = vadd.f32 %v342, 1.0
  %v344 = vrcp.pop %v343
  %v345 = vmul.f32 %v343, %v344
  %v346 = vsub.f32 1.0, %v345
  %v347 = vmul.f32 %v344, %v346
  %v348 = vadd.f32 %v344, %v347
  %vm349 = vweird.f32 %v343
  %vm350 = vweird.f32 %v344
  %vm351 = vmor %vm349, %vm350
  %v352 = vsel %vm351, %v344, %v348
  %v353 = vand.u32 2147483647, %v343
  %vm354 = vcmp.eq.f32.partialorder %v353, 8.507059e+37
  %v355 = vand.u32 %v343, 2147483648
  %v356 = vor.u32 1.1754944e-38, %v355
  %v357 = vsel %vm354, %v356, %v352
  %v358 = vmul.f32 1.0, %v357
  %v359 = vtanh.pop %v301
  %v360 = vmul.f32 %v339, %v245
  %v361 = vmul.f32 %v320, %v359
  %v362 = vadd.f32 %v360, %v361
  %v363 = vtanh.pop %v362
  %v364 = vmul.f32 %v358, %v363
  %s365 = scalar_lea.vmem %s0, 96
  %v366 = vld [vmem:[%s365] sm:$0xff]
  %v367 = vld [vmem:[%s365 + $0x8] sm:$0xff]
  %v368 = vld [vmem:[%s365 + $0x10] sm:$0xff]
  %v369 = vld [vmem:[%s365 + $0x18] sm:$0xff]
  %371 = vset.pattern.permute.xlu0 0
  %372 = vperm.xlu0 %371, %v364
  %v373 = vpop.permute.xlu0 %372
  %v375 = vmul.f32 %v373, %v20
  %v376 = vadd.f32 %v366, %v375
  %v377 = vmul.f32 %v373, %v23
  %v378 = vadd.f32 %v367, %v377
  %v379 = vmul.f32 %v373, %v26
  %v380 = vadd.f32 %v368, %v379
  %v381 = vmul.f32 %v373, %v29
  %v382 = vadd.f32 %v369, %v381
  %383 = vset.pattern.permute.xlu0 1
  %384 = vperm.xlu0 %383, %v364
  %v385 = vpop.permute.xlu0 %384
  %v387 = vmul.f32 %v385, %v32
  %v388 = vadd.f32 %v376, %v387
  %v389 = vmul.f32 %v385, %v35
  %v390 = vadd.f32 %v378, %v389
  %v391 = vmul.f32 %v385, %v38
  %v392 = vadd.f32 %v380, %v391
  %v393 = vmul.f32 %v385, %v41
  %v394 = vadd.f32 %v382, %v393
  %395 = vset.pattern.permute.xlu0 2
  %396 = vperm.xlu0 %395, %v364
  %v397 = vpop.permute.xlu0 %396
  %v399 = vmul.f32 %v397, %v44
  %v400 = vadd.f32 %v388, %v399
  %v401 = vmul.f32 %v397, %v47
  %v402 = vadd.f32 %v390, %v401
  %v403 = vmul.f32 %v397, %v50
  %v404 = vadd.f32 %v392, %v403
  %v405 = vmul.f32 %v397, %v53
  %v406 = vadd.f32 %v394, %v405
  %407 = vset.pattern.permute.xlu0 3
  %408 = vperm.xlu0 %407, %v364
  %v409 = vpop.permute.xlu0 %408
  %v411 = vmul.f32 %v409, %v56
  %v412 = vadd.f32 %v400, %v411
  %v413 = vmul.f32 %v409, %v59
  %v414 = vadd.f32 %v402, %v413
  %v415 = vmul.f32 %v409, %v62
  %v416 = vadd.f32 %v404, %v415
  %v417 = vmul.f32 %v409, %v65
  %v418 = vadd.f32 %v406, %v417
  %v419 = vxor.u32 %v412, 2147483648
  %v420 = vmul.f32 %v419, 1.442695
  %v421 = vpow.pop %v420
  %v422 = vadd.f32 %v421, 1.0
  %v423 = vrcp.pop %v422
  %v424 = vmul.f32 %v422, %v423
  %v425 = vsub.f32 1.0, %v424
  %v426 = vmul.f32 %v423, %v425
  %v427 = vadd.f32 %v423, %v426
  %vm428 = vweird.f32 %v422
  %vm429 = vweird.f32 %v423
  %vm430 = vmor %vm428, %vm429
  %v431 = vsel %vm430, %v423, %v427
  %v432 = vand.u32 2147483647, %v422
  %vm433 = vcmp.eq.f32.partialorder %v432, 8.507059e+37
  %v434 = vand.u32 %v422, 2147483648
  %v435 = vor.u32 1.1754944e-38, %v434
  %v436 = vsel %vm433, %v435, %v431
  %v437 = vmul.f32 1.0, %v436
  %v438 = vxor.u32 %v414, 2147483648
  %v439 = vmul.f32 %v438, 1.442695
  %v440 = vpow.pop %v439
  %v441 = vadd.f32 %v440, 1.0
  %v442 = vrcp.pop %v441
  %v443 = vmul.f32 %v441, %v442
  %v444 = vsub.f32 1.0, %v443
  %v445 = vmul.f32 %v442, %v444
  %v446 = vadd.f32 %v442, %v445
  %vm447 = vweird.f32 %v441
  %vm448 = vweird.f32 %v442
  %vm449 = vmor %vm447, %vm448
  %v450 = vsel %vm449, %v442, %v446
  %v451 = vand.u32 2147483647, %v441
  %vm452 = vcmp.eq.f32.partialorder %v451, 8.507059e+37
  %v453 = vand.u32 %v441, 2147483648
  %v454 = vor.u32 1.1754944e-38, %v453
  %v455 = vsel %vm452, %v454, %v450
  %v456 = vmul.f32 1.0, %v455
  %v457 = vxor.u32 %v416, 2147483648
  %v458 = vmul.f32 %v457, 1.442695
  %v459 = vpow.pop %v458
  %v460 = vadd.f32 %v459, 1.0
  %v461 = vrcp.pop %v460
  %v462 = vmul.f32 %v460, %v461
  %v463 = vsub.f32 1.0, %v462
  %v464 = vmul.f32 %v461, %v463
  %v465 = vadd.f32 %v461, %v464
  %vm466 = vweird.f32 %v460
  %vm467 = vweird.f32 %v461
  %vm468 = vmor %vm466, %vm467
  %v469 = vsel %vm468, %v461, %v465
  %v470 = vand.u32 2147483647, %v460
  %vm471 = vcmp.eq.f32.partialorder %v470, 8.507059e+37
  %v472 = vand.u32 %v460, 2147483648
  %v473 = vor.u32 1.1754944e-38, %v472
  %v474 = vsel %vm471, %v473, %v469
  %v475 = vmul.f32 1.0, %v474
  %v476 = vtanh.pop %v418
  %v477 = vmul.f32 %v456, %v362
  %v478 = vmul.f32 %v437, %v476
  %v479 = vadd.f32 %v477, %v478
  %v480 = vtanh.pop %v479
  %v481 = vmul.f32 %v475, %v480
  %s482 = scalar_lea.vmem %s0, 128
  %v483 = vld [vmem:[%s482] sm:$0xff]
  %v484 = vld [vmem:[%s482 + $0x8] sm:$0xff]
  %v485 = vld [vmem:[%s482 + $0x10] sm:$0xff]
  %v486 = vld [vmem:[%s482 + $0x18] sm:$0xff]
  %488 = vset.pattern.permute.xlu0 0
  %489 = vperm.xlu0 %488, %v481
  %v490 = vpop.permute.xlu0 %489
  %v492 = vmul.f32 %v490, %v20
  %v493 = vadd.f32 %v483, %v492
  %v494 = vmul.f32 %v490, %v23
  %v495 = vadd.f32 %v484, %v494
  %v496 = vmul.f32 %v490, %v26
  %v497 = vadd.f32 %v485, %v496
  %v498 = vmul.f32 %v490, %v29
  %v499 = vadd.f32 %v486, %v498
  %500 = vset.pattern.permute.xlu0 1
  %501 = vperm.xlu0 %500, %v481
  %v502 = vpop.permute.xlu0 %501
  %v504 = vmul.f32 %v502, %v32
  %v505 = vadd.f32 %v493, %v504
  %v506 = vmul.f32 %v502, %v35
  %v507 = vadd.f32 %v495, %v506
  %v508 = vmul.f32 %v502, %v38
  %v509 = vadd.f32 %v497, %v508
  %v510 = vmul.f32 %v502, %v41
  %v511 = vadd.f32 %v499, %v510
  %512 = vset.pattern.permute.xlu0 2
  %513 = vperm.xlu0 %512, %v481
  %v514 = vpop.permute.xlu0 %513
  %v516 = vmul.f32 %v514, %v44
  %v517 = vadd.f32 %v505, %v516
  %v518 = vmul.f32 %v514, %v47
  %v519 = vadd.f32 %v507, %v518
  %v520 = vmul.f32 %v514, %v50
  %v521 = vadd.f32 %v509, %v520
  %v522 = vmul.f32 %v514, %v53
  %v523 = vadd.f32 %v511, %v522
  %524 = vset.pattern.permute.xlu0 3
  %525 = vperm.xlu0 %524, %v481
  %v526 = vpop.permute.xlu0 %525
  %v528 = vmul.f32 %v526, %v56
  %v529 = vadd.f32 %v517, %v528
  %v530 = vmul.f32 %v526, %v59
  %v531 = vadd.f32 %v519, %v530
  %v532 = vmul.f32 %v526, %v62
  %v533 = vadd.f32 %v521, %v532
  %v534 = vmul.f32 %v526, %v65
  %v535 = vadd.f32 %v523, %v534
  %v536 = vxor.u32 %v529, 2147483648
  %v537 = vmul.f32 %v536, 1.442695
  %v538 = vpow.pop %v537
  %v539 = vadd.f32 %v538, 1.0
  %v540 = vrcp.pop %v539
  %v541 = vmul.f32 %v539, %v540
  %v542 = vsub.f32 1.0, %v541
  %v543 = vmul.f32 %v540, %v542
  %v544 = vadd.f32 %v540, %v543
  %vm545 = vweird.f32 %v539
  %vm546 = vweird.f32 %v540
  %vm547 = vmor %vm545, %vm546
  %v548 = vsel %vm547, %v540, %v544
  %v549 = vand.u32 2147483647, %v539
  %vm550 = vcmp.eq.f32.partialorder %v549, 8.507059e+37
  %v551 = vand.u32 %v539, 2147483648
  %v552 = vor.u32 1.1754944e-38, %v551
  %v553 = vsel %vm550, %v552, %v548
  %v554 = vmul.f32 1.0, %v553
  %v555 = vxor.u32 %v531, 2147483648
  %v556 = vmul.f32 %v555, 1.442695
  %v557 = vpow.pop %v556
  %v558 = vadd.f32 %v557, 1.0
  %v559 = vrcp.pop %v558
  %v560 = vmul.f32 %v558, %v559
  %v561 = vsub.f32 1.0, %v560
  %v562 = vmul.f32 %v559, %v561
  %v563 = vadd.f32 %v559, %v562
  %vm564 = vweird.f32 %v558
  %vm565 = vweird.f32 %v559
  %vm566 = vmor %vm564, %vm565
  %v567 = vsel %vm566, %v559, %v563
  %v568 = vand.u32 2147483647, %v558
  %vm569 = vcmp.eq.f32.partialorder %v568, 8.507059e+37
  %v570 = vand.u32 %v558, 2147483648
  %v571 = vor.u32 1.1754944e-38, %v570
  %v572 = vsel %vm569, %v571, %v567
  %v573 = vmul.f32 1.0, %v572
  %v574 = vxor.u32 %v533, 2147483648
  %v575 = vmul.f32 %v574, 1.442695
  %v576 = vpow.pop %v575
  %v577 = vadd.f32 %v576, 1.0
  %v578 = vrcp.pop %v577
  %v579 = vmul.f32 %v577, %v578
  %v580 = vsub.f32 1.0, %v579
  %v581 = vmul.f32 %v578, %v580
  %v582 = vadd.f32 %v578, %v581
  %vm583 = vweird.f32 %v577
  %vm584 = vweird.f32 %v578
  %vm585 = vmor %vm583, %vm584
  %v586 = vsel %vm585, %v578, %v582
  %v587 = vand.u32 2147483647, %v577
  %vm588 = vcmp.eq.f32.partialorder %v587, 8.507059e+37
  %v589 = vand.u32 %v577, 2147483648
  %v590 = vor.u32 1.1754944e-38, %v589
  %v591 = vsel %vm588, %v590, %v586
  %v592 = vmul.f32 1.0, %v591
  %v593 = vtanh.pop %v535
  %v594 = vmul.f32 %v573, %v479
  %v595 = vmul.f32 %v554, %v593
  %v596 = vadd.f32 %v594, %v595
  %v597 = vtanh.pop %v596
  %v598 = vmul.f32 %v592, %v597
  %s599 = scalar_lea.vmem %s0, 160
  %v600 = vld [vmem:[%s599] sm:$0xff]
  %v601 = vld [vmem:[%s599 + $0x8] sm:$0xff]
  %v602 = vld [vmem:[%s599 + $0x10] sm:$0xff]
  %v603 = vld [vmem:[%s599 + $0x18] sm:$0xff]
  %605 = vset.pattern.permute.xlu0 0
  %606 = vperm.xlu0 %605, %v598
  %v607 = vpop.permute.xlu0 %606
  %v609 = vmul.f32 %v607, %v20
  %v610 = vadd.f32 %v600, %v609
  %v611 = vmul.f32 %v607, %v23
  %v612 = vadd.f32 %v601, %v611
  %v613 = vmul.f32 %v607, %v26
  %v614 = vadd.f32 %v602, %v613
  %v615 = vmul.f32 %v607, %v29
  %v616 = vadd.f32 %v603, %v615
  %617 = vset.pattern.permute.xlu0 1
  %618 = vperm.xlu0 %617, %v598
  %v619 = vpop.permute.xlu0 %618
  %v621 = vmul.f32 %v619, %v32
  %v622 = vadd.f32 %v610, %v621
  %v623 = vmul.f32 %v619, %v35
  %v624 = vadd.f32 %v612, %v623
  %v625 = vmul.f32 %v619, %v38
  %v626 = vadd.f32 %v614, %v625
  %v627 = vmul.f32 %v619, %v41
  %v628 = vadd.f32 %v616, %v627
  %629 = vset.pattern.permute.xlu0 2
  %630 = vperm.xlu0 %629, %v598
  %v631 = vpop.permute.xlu0 %630
  %v633 = vmul.f32 %v631, %v44
  %v634 = vadd.f32 %v622, %v633
  %v635 = vmul.f32 %v631, %v47
  %v636 = vadd.f32 %v624, %v635
  %v637 = vmul.f32 %v631, %v50
  %v638 = vadd.f32 %v626, %v637
  %v639 = vmul.f32 %v631, %v53
  %v640 = vadd.f32 %v628, %v639
  %641 = vset.pattern.permute.xlu0 3
  %642 = vperm.xlu0 %641, %v598
  %v643 = vpop.permute.xlu0 %642
  %v645 = vmul.f32 %v643, %v56
  %v646 = vadd.f32 %v634, %v645
  %v647 = vmul.f32 %v643, %v59
  %v648 = vadd.f32 %v636, %v647
  %v649 = vmul.f32 %v643, %v62
  %v650 = vadd.f32 %v638, %v649
  %v651 = vmul.f32 %v643, %v65
  %v652 = vadd.f32 %v640, %v651
  %v653 = vxor.u32 %v646, 2147483648
  %v654 = vmul.f32 %v653, 1.442695
  %v655 = vpow.pop %v654
  %v656 = vadd.f32 %v655, 1.0
  %v657 = vrcp.pop %v656
  %v658 = vmul.f32 %v656, %v657
  %v659 = vsub.f32 1.0, %v658
  %v660 = vmul.f32 %v657, %v659
  %v661 = vadd.f32 %v657, %v660
  %vm662 = vweird.f32 %v656
  %vm663 = vweird.f32 %v657
  %vm664 = vmor %vm662, %vm663
  %v665 = vsel %vm664, %v657, %v661
  %v666 = vand.u32 2147483647, %v656
  %vm667 = vcmp.eq.f32.partialorder %v666, 8.507059e+37
  %v668 = vand.u32 %v656, 2147483648
  %v669 = vor.u32 1.1754944e-38, %v668
  %v670 = vsel %vm667, %v669, %v665
  %v671 = vmul.f32 1.0, %v670
  %v672 = vxor.u32 %v648, 2147483648
  %v673 = vmul.f32 %v672, 1.442695
  %v674 = vpow.pop %v673
  %v675 = vadd.f32 %v674, 1.0
  %v676 = vrcp.pop %v675
  %v677 = vmul.f32 %v675, %v676
  %v678 = vsub.f32 1.0, %v677
  %v679 = vmul.f32 %v676, %v678
  %v680 = vadd.f32 %v676, %v679
  %vm681 = vweird.f32 %v675
  %vm682 = vweird.f32 %v676
  %vm683 = vmor %vm681, %vm682
  %v684 = vsel %vm683, %v676, %v680
  %v685 = vand.u32 2147483647, %v675
  %vm686 = vcmp.eq.f32.partialorder %v685, 8.507059e+37
  %v687 = vand.u32 %v675, 2147483648
  %v688 = vor.u32 1.1754944e-38, %v687
  %v689 = vsel %vm686, %v688, %v684
  %v690 = vmul.f32 1.0, %v689
  %v691 = vxor.u32 %v650, 2147483648
  %v692 = vmul.f32 %v691, 1.442695
  %v693 = vpow.pop %v692
  %v694 = vadd.f32 %v693, 1.0
  %v695 = vrcp.pop %v694
  %v696 = vmul.f32 %v694, %v695
  %v697 = vsub.f32 1.0, %v696
  %v698 = vmul.f32 %v695, %v697
  %v699 = vadd.f32 %v695, %v698
  %vm700 = vweird.f32 %v694
  %vm701 = vweird.f32 %v695
  %vm702 = vmor %vm700, %vm701
  %v703 = vsel %vm702, %v695, %v699
  %v704 = vand.u32 2147483647, %v694
  %vm705 = vcmp.eq.f32.partialorder %v704, 8.507059e+37
  %v706 = vand.u32 %v694, 2147483648
  %v707 = vor.u32 1.1754944e-38, %v706
  %v708 = vsel %vm705, %v707, %v703
  %v709 = vmul.f32 1.0, %v708
  %v710 = vtanh.pop %v652
  %v711 = vmul.f32 %v690, %v596
  %v712 = vmul.f32 %v671, %v710
  %v713 = vadd.f32 %v711, %v712
  %v714 = vtanh.pop %v713
  %v715 = vmul.f32 %v709, %v714
  %s716 = scalar_lea.vmem %s0, 192
  %v717 = vld [vmem:[%s716] sm:$0xff]
  %v718 = vld [vmem:[%s716 + $0x8] sm:$0xff]
  %v719 = vld [vmem:[%s716 + $0x10] sm:$0xff]
  %v720 = vld [vmem:[%s716 + $0x18] sm:$0xff]
  %722 = vset.pattern.permute.xlu0 0
  %723 = vperm.xlu0 %722, %v715
  %v724 = vpop.permute.xlu0 %723
  %v726 = vmul.f32 %v724, %v20
  %v727 = vadd.f32 %v717, %v726
  %v728 = vmul.f32 %v724, %v23
  %v729 = vadd.f32 %v718, %v728
  %v730 = vmul.f32 %v724, %v26
  %v731 = vadd.f32 %v719, %v730
  %v732 = vmul.f32 %v724, %v29
  %v733 = vadd.f32 %v720, %v732
  %734 = vset.pattern.permute.xlu0 1
  %735 = vperm.xlu0 %734, %v715
  %v736 = vpop.permute.xlu0 %735
  %v738 = vmul.f32 %v736, %v32
  %v739 = vadd.f32 %v727, %v738
  %v740 = vmul.f32 %v736, %v35
  %v741 = vadd.f32 %v729, %v740
  %v742 = vmul.f32 %v736, %v38
  %v743 = vadd.f32 %v731, %v742
  %v744 = vmul.f32 %v736, %v41
  %v745 = vadd.f32 %v733, %v744
  %746 = vset.pattern.permute.xlu0 2
  %747 = vperm.xlu0 %746, %v715
  %v748 = vpop.permute.xlu0 %747
  %v750 = vmul.f32 %v748, %v44
  %v751 = vadd.f32 %v739, %v750
  %v752 = vmul.f32 %v748, %v47
  %v753 = vadd.f32 %v741, %v752
  %v754 = vmul.f32 %v748, %v50
  %v755 = vadd.f32 %v743, %v754
  %v756 = vmul.f32 %v748, %v53
  %v757 = vadd.f32 %v745, %v756
  %758 = vset.pattern.permute.xlu0 3
  %759 = vperm.xlu0 %758, %v715
  %v760 = vpop.permute.xlu0 %759
  %v762 = vmul.f32 %v760, %v56
  %v763 = vadd.f32 %v751, %v762
  %v764 = vmul.f32 %v760, %v59
  %v765 = vadd.f32 %v753, %v764
  %v766 = vmul.f32 %v760, %v62
  %v767 = vadd.f32 %v755, %v766
  %v768 = vmul.f32 %v760, %v65
  %v769 = vadd.f32 %v757, %v768
  %v770 = vxor.u32 %v763, 2147483648
  %v771 = vmul.f32 %v770, 1.442695
  %v772 = vpow.pop %v771
  %v773 = vadd.f32 %v772, 1.0
  %v774 = vrcp.pop %v773
  %v775 = vmul.f32 %v773, %v774
  %v776 = vsub.f32 1.0, %v775
  %v777 = vmul.f32 %v774, %v776
  %v778 = vadd.f32 %v774, %v777
  %vm779 = vweird.f32 %v773
  %vm780 = vweird.f32 %v774
  %vm781 = vmor %vm779, %vm780
  %v782 = vsel %vm781, %v774, %v778
  %v783 = vand.u32 2147483647, %v773
  %vm784 = vcmp.eq.f32.partialorder %v783, 8.507059e+37
  %v785 = vand.u32 %v773, 2147483648
  %v786 = vor.u32 1.1754944e-38, %v785
  %v787 = vsel %vm784, %v786, %v782
  %v788 = vmul.f32 1.0, %v787
  %v789 = vxor.u32 %v765, 2147483648
  %v790 = vmul.f32 %v789, 1.442695
  %v791 = vpow.pop %v790
  %v792 = vadd.f32 %v791, 1.0
  %v793 = vrcp.pop %v792
  %v794 = vmul.f32 %v792, %v793
  %v795 = vsub.f32 1.0, %v794
  %v796 = vmul.f32 %v793, %v795
  %v797 = vadd.f32 %v793, %v796
  %vm798 = vweird.f32 %v792
  %vm799 = vweird.f32 %v793
  %vm800 = vmor %vm798, %vm799
  %v801 = vsel %vm800, %v793, %v797
  %v802 = vand.u32 2147483647, %v792
  %vm803 = vcmp.eq.f32.partialorder %v802, 8.507059e+37
  %v804 = vand.u32 %v792, 2147483648
  %v805 = vor.u32 1.1754944e-38, %v804
  %v806 = vsel %vm803, %v805, %v801
  %v807 = vmul.f32 1.0, %v806
  %v808 = vxor.u32 %v767, 2147483648
  %v809 = vmul.f32 %v808, 1.442695
  %v810 = vpow.pop %v809
  %v811 = vadd.f32 %v810, 1.0
  %v812 = vrcp.pop %v811
  %v813 = vmul.f32 %v811, %v812
  %v814 = vsub.f32 1.0, %v813
  %v815 = vmul.f32 %v812, %v814
  %v816 = vadd.f32 %v812, %v815
  %vm817 = vweird.f32 %v811
  %vm818 = vweird.f32 %v812
  %vm819 = vmor %vm817, %vm818
  %v820 = vsel %vm819, %v812, %v816
  %v821 = vand.u32 2147483647, %v811
  %vm822 = vcmp.eq.f32.partialorder %v821, 8.507059e+37
  %v823 = vand.u32 %v811, 2147483648
  %v824 = vor.u32 1.1754944e-38, %v823
  %v825 = vsel %vm822, %v824, %v820
  %v826 = vmul.f32 1.0, %v825
  %v827 = vtanh.pop %v769
  %v828 = vmul.f32 %v807, %v713
  %v829 = vmul.f32 %v788, %v827
  %v830 = vadd.f32 %v828, %v829
  %v831 = vtanh.pop %v830
  %v832 = vmul.f32 %v826, %v831
  %s833 = scalar_lea.vmem %s0, 224
  %v834 = vld [vmem:[%s833] sm:$0xff]
  %v835 = vld [vmem:[%s833 + $0x8] sm:$0xff]
  %v836 = vld [vmem:[%s833 + $0x10] sm:$0xff]
  %v837 = vld [vmem:[%s833 + $0x18] sm:$0xff]
  %839 = vset.pattern.permute.xlu0 0
  %840 = vperm.xlu0 %839, %v832
  %v841 = vpop.permute.xlu0 %840
  %v843 = vmul.f32 %v841, %v20
  %v844 = vadd.f32 %v834, %v843
  %v845 = vmul.f32 %v841, %v23
  %v846 = vadd.f32 %v835, %v845
  %v847 = vmul.f32 %v841, %v26
  %v848 = vadd.f32 %v836, %v847
  %v849 = vmul.f32 %v841, %v29
  %v850 = vadd.f32 %v837, %v849
  %851 = vset.pattern.permute.xlu0 1
  %852 = vperm.xlu0 %851, %v832
  %v853 = vpop.permute.xlu0 %852
  %v855 = vmul.f32 %v853, %v32
  %v856 = vadd.f32 %v844, %v855
  %v857 = vmul.f32 %v853, %v35
  %v858 = vadd.f32 %v846, %v857
  %v859 = vmul.f32 %v853, %v38
  %v860 = vadd.f32 %v848, %v859
  %v861 = vmul.f32 %v853, %v41
  %v862 = vadd.f32 %v850, %v861
  %863 = vset.pattern.permute.xlu0 2
  %864 = vperm.xlu0 %863, %v832
  %v865 = vpop.permute.xlu0 %864
  %v867 = vmul.f32 %v865, %v44
  %v868 = vadd.f32 %v856, %v867
  %v869 = vmul.f32 %v865, %v47
  %v870 = vadd.f32 %v858, %v869
  %v871 = vmul.f32 %v865, %v50
  %v872 = vadd.f32 %v860, %v871
  %v873 = vmul.f32 %v865, %v53
  %v874 = vadd.f32 %v862, %v873
  %875 = vset.pattern.permute.xlu0 3
  %876 = vperm.xlu0 %875, %v832
  %v877 = vpop.permute.xlu0 %876
  %v879 = vmul.f32 %v877, %v56
  %v880 = vadd.f32 %v868, %v879
  %v881 = vmul.f32 %v877, %v59
  %v882 = vadd.f32 %v870, %v881
  %v883 = vmul.f32 %v877, %v62
  %v884 = vadd.f32 %v872, %v883
  %v885 = vmul.f32 %v877, %v65
  %v886 = vadd.f32 %v874, %v885
  %v887 = vxor.u32 %v880, 2147483648
  %v888 = vmul.f32 %v887, 1.442695
  %v889 = vpow.pop %v888
  %v890 = vadd.f32 %v889, 1.0
  %v891 = vrcp.pop %v890
  %v892 = vmul.f32 %v890, %v891
  %v893 = vsub.f32 1.0, %v892
  %v894 = vmul.f32 %v891, %v893
  %v895 = vadd.f32 %v891, %v894
  %vm896 = vweird.f32 %v890
  %vm897 = vweird.f32 %v891
  %vm898 = vmor %vm896, %vm897
  %v899 = vsel %vm898, %v891, %v895
  %v900 = vand.u32 2147483647, %v890
  %vm901 = vcmp.eq.f32.partialorder %v900, 8.507059e+37
  %v902 = vand.u32 %v890, 2147483648
  %v903 = vor.u32 1.1754944e-38, %v902
  %v904 = vsel %vm901, %v903, %v899
  %v905 = vmul.f32 1.0, %v904
  %v906 = vxor.u32 %v882, 2147483648
  %v907 = vmul.f32 %v906, 1.442695
  %v908 = vpow.pop %v907
  %v909 = vadd.f32 %v908, 1.0
  %v910 = vrcp.pop %v909
  %v911 = vmul.f32 %v909, %v910
  %v912 = vsub.f32 1.0, %v911
  %v913 = vmul.f32 %v910, %v912
  %v914 = vadd.f32 %v910, %v913
  %vm915 = vweird.f32 %v909
  %vm916 = vweird.f32 %v910
  %vm917 = vmor %vm915, %vm916
  %v918 = vsel %vm917, %v910, %v914
  %v919 = vand.u32 2147483647, %v909
  %vm920 = vcmp.eq.f32.partialorder %v919, 8.507059e+37
  %v921 = vand.u32 %v909, 2147483648
  %v922 = vor.u32 1.1754944e-38, %v921
  %v923 = vsel %vm920, %v922, %v918
  %v924 = vmul.f32 1.0, %v923
  %v925 = vxor.u32 %v884, 2147483648
  %v926 = vmul.f32 %v925, 1.442695
  %v927 = vpow.pop %v926
  %v928 = vadd.f32 %v927, 1.0
  %v929 = vrcp.pop %v928
  %v930 = vmul.f32 %v928, %v929
  %v931 = vsub.f32 1.0, %v930
  %v932 = vmul.f32 %v929, %v931
  %v933 = vadd.f32 %v929, %v932
  %vm934 = vweird.f32 %v928
  %vm935 = vweird.f32 %v929
  %vm936 = vmor %vm934, %vm935
  %v937 = vsel %vm936, %v929, %v933
  %v938 = vand.u32 2147483647, %v928
  %vm939 = vcmp.eq.f32.partialorder %v938, 8.507059e+37
  %v940 = vand.u32 %v928, 2147483648
  %v941 = vor.u32 1.1754944e-38, %v940
  %v942 = vsel %vm939, %v941, %v937
  %v943 = vmul.f32 1.0, %v942
  %v944 = vtanh.pop %v886
  %v945 = vmul.f32 %v924, %v830
  %v946 = vmul.f32 %v905, %v944
  %v947 = vadd.f32 %v945, %v946
  %v948 = vtanh.pop %v947
  %v949 = vmul.f32 %v943, %v948
  %v950 = vld [vmem:[%s1] sm:$0xff]
  %v951 = vld [vmem:[%s2 + $0x10] sm:$0xf]
  %vm952 = vcmask 31744
  %v954 = vsel %vm952, %v949, 0
  %vm956 = vcmask 1043456
  %v958 = vsel %vm956, %v951, 0
  %960 = vmatpush.msra.mxu0 0.0
  %961 = vmatpush.msra.mxu0 0.0
  %962 = vmatpush.msra.mxu0 0.0
  %963 = vmatpush.msra.mxu0 0.0
  %964 = vmatpush.msra.mxu0 0.0
  %965 = vmatpush.msra.mxu0 0.0
  %966 = vmatpush.msra.mxu0 0.0
  %967 = vmatpush.msra.mxu0 0.0
  %968 = vmatpush.msra.mxu0 0.0
  %969 = vmatpush.msra.mxu0 0.0
  %970 = vmatpush.msra.mxu0 0.0
  %971 = vmatpush.msra.mxu0 0.0
  %972 = vmatpush.msra.mxu0 0.0
  %973 = vmatpush.msra.mxu0 0.0
  %974 = vmatpush.msra.mxu0 0.0
  %975 = vmatpush.msra.mxu0 %v958
  %976 = vmatmul.f32.gmra.mxu0 %v954
  %v977 = vpop.f32.mrf.mxu0
  %v978 = vadd.f32 0.0, %v977
  %979 = vdwg.mxu0
  %v980 = vadd.f32 %v950, %v978
  %v981 = vmax.f32 %v980, 0.0
  %v982 = vld [vmem:[%s2 + $0x18] sm:$0x1]
  %v983 = vperm.slane %v982, 0
  %v984 = vmul.f32 %v981, %v983
  %v985 = vld [vmem:[%s2 + $0x20] sm:$0x1]
  %v986 = vperm.slane %v985, 0
  %v987 = vadd.f32 %v984, %v986
  %v988 = vld [vmem:[%s2 + $0x28] sm:$0xff]
  %v989 = vld [vmem:[%s2 + $0x30] sm:$0xff]
  %v990 = vld [vmem:[%s2 + $0x38] sm:$0xff]
  %v991 = vld [vmem:[%s2 + $0x40] sm:$0xff]
  %v992 = vld [vmem:[%s2 + $0x48] sm:$0x1]
  %v993 = vld [vmem:[%s2 + $0x50] sm:$0x1]
  %v994 = vld [vmem:[%s2 + $0x58] sm:$0x1]
  %v995 = vperm.slane %v992, 0
  %vm996 = vcmask 261120
  %v998 = vsel %vm996, %v987, 0
  %1000 = vmatpush.msra.mxu0 0.0
  %1001 = vmatpush.msra.mxu0 0.0
  %1002 = vmatpush.msra.mxu0 0.0
  %1003 = vmatpush.msra.mxu0 0.0
  %1004 = vmatpush.msra.mxu0 0.0
  %1005 = vmatpush.msra.mxu0 0.0
  %1006 = vmatpush.msra.mxu0 0.0
  %1007 = vmatpush.msra.mxu0 0.0
  %1008 = vmatpush.msra.mxu0 0.0
  %1009 = vmatpush.msra.mxu0 0.0
  %1010 = vmatpush.msra.mxu0 0.0
  %1011 = vmatpush.msra.mxu0 0.0
  %1012 = vmatpush.msra.mxu0 %v991
  %1013 = vmatpush.msra.mxu0 %v990
  %1014 = vmatpush.msra.mxu0 %v989
  %1015 = vmatpush.msra.mxu0 %v988
  %1016 = vmatmul.f32.gmra.mxu0 %v998
  %v1017 = vpop.f32.mrf.mxu0
  %v1018 = vadd.f32 %v995, %v1017
  %1019 = vdwg.mxu0
  %v1020 = vmax.f32 %v1018, 0.0
  %v1021 = vperm.slane %v993, 0
  %v1022 = vmul.f32 %v1020, %v1021
  %v1023 = vperm.slane %v994, 0
  %v1024 = vadd.f32 %v1022, %v1023
  %v1025 = vld [vmem:[%s2 + $0x60] sm:$0xff]
  %v1026 = vld [vmem:[%s2 + $0x68] sm:$0xff]
  %v1027 = vld [vmem:[%s2 + $0x70] sm:$0x1]
  %v1028 = vperm.slane %v1027, 0
  %vm1029 = vcmask 130048
  %v1031 = vsel %vm1029, %v1024, 0
  %1033 = vmatpush.msra.mxu0 0.0
  %1034 = vmatpush.msra.mxu0 0.0
  %1035 = vmatpush.msra.mxu0 0.0
  %1036 = vmatpush.msra.mxu0 0.0
  %1037 = vmatpush.msra.mxu0 0.0
  %1038 = vmatpush.msra.mxu0 0.0
  %1039 = vmatpush.msra.mxu0 0.0
  %1040 = vmatpush.msra.mxu0 0.0
  %1041 = vmatpush.msra.mxu0 0.0
  %1042 = vmatpush.msra.mxu0 0.0
  %1043 = vmatpush.msra.mxu0 0.0
  %1044 = vmatpush.msra.mxu0 0.0
  %1045 = vmatpush.msra.mxu0 0.0
  %1046 = vmatpush.msra.mxu0 0.0
  %1047 = vmatpush.msra.mxu0 %v1026
  %1048 = vmatpush.msra.mxu0 %v1025
  %1049 = vmatmul.f32.gmra.mxu0 %v1031
  %v1050 = vpop.f32.mrf.mxu0
  %v1051 = vadd.f32 %v1028, %v1050
  %1052 = vdwg.mxu0
  %vm1053 = vcmask 15360
  %1054 = vst.msk [vmem:[%s3] sm:$0xff] %vm1053, %v1051
  // Predicated region
  $region14: #{_forward.1} parent=0 // pred_check
    _
  $region15: #{_forward.1} parent=0 // pred_check_branch
    %1056 = sbr.rel (0) target = $region17
  $region16: #{_forward.1} parent=0 // pred_region
    _
  $region17: #{_forward.1} parent=0 // pred_fallthru
    _
  // Predicated region
  $region18: #{_forward.1} parent=0 // pred_check
    _
  $region19: #{_forward.1} parent=0 // pred_check_branch
    %1058 = sbr.rel (0) target = $region21
  $region20: #{_forward.1} parent=0 // pred_region
    _
  $region21: #{_forward.1} parent=0 // pred_fallthru
    _

</llo_original>
